<compile_context>
chip_gen: v5e
topology: v5e:2x2
jax: 0.10.0
libtpu: 0.0.40
codegen_flags: <defaults>
</compile_context>

<pallas_src>
import functools

import jax
import jax.numpy as jnp
from jax.experimental import pallas as pl
from jax.experimental.pallas import tpu as pltpu

CAM = 6            # nuScenes camera count (hardcoded 6 in the module)
NUM_CLASSES = 10   # module hardcodes 10 class names


def _round_up(x, m):
    return (x + m - 1) // m * m


# --------------------------------------------------------------------------
# Fused kernel: encode-matmul (tiled over K) + normalize/logits/softmax +
# camera aggregation + max/argmax epilogue.
# --------------------------------------------------------------------------
def clip_fused_kernel(x_ref, w_ref, t_ref, maskcol_ref, mask2d_ref, agg_ref,
                      score_ref, label_ref, acc_ref):
    k = pl.program_id(1)

    @pl.when(k == 0)
    def _():
        acc_ref[...] = jnp.zeros_like(acc_ref)

    # Stand-in for clip.encode_image: bf16 linear projection, f32 accumulation.
    acc_ref[...] += jnp.dot(x_ref[...], w_ref[...],
                            preferred_element_type=jnp.float32)

    @pl.when(k == pl.num_programs(1) - 1)
    def _():
        feat = acc_ref[...]                                      # (tm, D) f32
        # image_features / ||image_features||.
        # NOTE: rsqrt(x + 1e-12) gives 0 (not NaN) for an all-zero feature row,
        # unlike the reference's divide-by-norm; downstream nan handling covers it.
        inv_img = jax.lax.rsqrt(
            jnp.sum(feat * feat, axis=-1, keepdims=True) + 1e-12)
        feat = feat * inv_img

        # logit_scale * img_feat @ text_feat.T
        # (text features are pre-normalized and pre-scaled in the wrapper).
        logits = jnp.dot(feat, t_ref[...],
                         preferred_element_type=jnp.float32)     # (tm, C)

        # softmax over classes (f32, exact division keeps label argmax stable).
        m = jnp.max(logits, axis=-1, keepdims=True)
        e = jnp.exp(logits - m)
        probs = e / jnp.sum(e, axis=-1, keepdims=True)           # (tm, C)

        # box_probs masked by camera validity; rows are (box, cam) pairs, so the
        # per-box sum over the 6 cameras is agg (BPT, tm) @ masked (tm, C).
        masked = probs * maskcol_ref[...]                        # (tm, C)
        box_sum = jnp.dot(agg_ref[...], masked,
                          preferred_element_type=jnp.float32)    # (BPT, C)
        denom = 1e-5 + jnp.sum(mask2d_ref[...], axis=-1,
                               keepdims=True)                    # (BPT, 1)
        mean = box_sum / denom                                   # (BPT, C)

        # torch.max(..., dim=-1): value + first max index.
        n_cls = mean.shape[-1]
        max_val = jnp.max(mean, axis=-1, keepdims=True)          # (BPT, 1)
        ids = jax.lax.broadcasted_iota(jnp.int32, mean.shape, 1)
        first_max = jnp.min(jnp.where(mean == max_val, ids, n_cls),
                            axis=-1, keepdims=True)
        # all-NaN row: nothing matched -> fall back to index 0 like argmax.
        first_max = jnp.where(first_max >= n_cls, 0, first_max)

        # torch.nan_to_num(pred_scores, nan=0.0)
        score_ref[...] = jnp.where(jnp.isnan(max_val), 0.0,
                                   max_val).astype(score_ref.dtype)
        label_ref[...] = first_max.astype(label_ref.dtype)


# --------------------------------------------------------------------------
# Wrapper
# --------------------------------------------------------------------------
@functools.partial(jax.jit, static_argnames=("tk",))
def clip_box_classification_forward(crops, cam_mask, w_enc, text_features,
                                    logit_scale, *, tk=256):
    """
    crops:         [N, CAM, 3, H, W]  float32  (already-extracted 6-camera crops)
    cam_mask:      [N, CAM]           float32  (1.0 where a valid crop exists)
    w_enc:         [3*H*W, D]         float32  (stand-in CLIP image encoder)
    text_features: [C, D]             float32  (precomputed text embeddings)
    logit_scale:   [1]                float32  (already exp()-ed scale)
    tk:            contraction-tile size; raise to 4096-16384 for real CLIP
                   F = 3*224*224 (v6e 128 MiB VMEM) and ~half that on v7x.
    returns: (pred_scores [N], pred_labels [N])   labels are 1-based (relabel).
    """
    N, cam, ch, H, W = crops.shape
    assert cam == CAM
    F = ch * H * W
    D = w_enc.shape[1]
    C = text_features.shape[0]

    # ---- static tiling ----------------------------------------------------
    tk = max(128, _round_up(tk, 128))
    F_pad = _round_up(F, tk)
    # Boxes per M-tile: multiple of 8 (sublane legality when multiple tiles);
    # cap 64 boxes -> tm = 384 rows = 3 full MXU row-passes at real scale.
    bpt = min(64, _round_up(N, 8))
    N_pad = _round_up(N, bpt)
    tm = bpt * CAM
    M_pad = N_pad * CAM
    n_m_tiles = N_pad // bpt
    n_k_tiles = F_pad // tk

    # ---- host-side packing (layout plumbing, not compute hoisting) ---------
    crops_flat = crops.reshape(N * CAM, F)
    crops_flat = jnp.pad(
        crops_flat, ((0, M_pad - N * CAM), (0, F_pad - F))).astype(jnp.bfloat16)
    w_pad = jnp.pad(w_enc, ((0, F_pad - F), (0, 0))).astype(jnp.bfloat16)

    # Normalize text features and fold logit_scale in once (constant per call).
    t = text_features / jnp.linalg.norm(text_features, axis=1, keepdims=True)
    t_scaled_t = (logit_scale[0] * t).T.astype(jnp.float32)       # (D, C)

    mask2d = jnp.pad(cam_mask.astype(jnp.float32), ((0, N_pad - N), (0, 0)))
    mask_col = mask2d.reshape(M_pad, 1)
    # Block-local box<-row aggregation matrix (identical for every M tile).
    agg = (jnp.arange(tm, dtype=jnp.int32) // CAM
           == jnp.arange(bpt, dtype=jnp.int32)[:, None]).astype(jnp.float32)

    # ---- VMEM budget: double-buffered streams + resident accumulator -------
    vmem_need = (2 * tm * tk * 2            # crop tiles (bf16, double-buffered)
                 + 2 * tk * D * 2           # weight tiles (bf16, double-buffered)
                 + tm * D * 4               # f32 accumulator
                 + D * C * 4 + bpt * tm * 4 + tm * 4 + bpt * CAM * 4
                 + 2 * 2 * bpt * 4)         # outputs
    vmem_limit = int(min(64 * 1024 * 1024, max(4 * vmem_need, 8 * 1024 * 1024)))

    scores, labels = pl.pallas_call(
        clip_fused_kernel,
        out_shape=(
            jax.ShapeDtypeStruct((N_pad, 1), jnp.float32),
            jax.ShapeDtypeStruct((N_pad, 1), jnp.int32),
        ),
        grid_spec=pltpu.PrefetchScalarGridSpec(
            num_scalar_prefetch=0,
            grid=(n_m_tiles, n_k_tiles),
            in_specs=[
                pl.BlockSpec((tm, tk), lambda i, k: (i, k)),     # crops (bf16)
                pl.BlockSpec((tk, D), lambda i, k: (k, 0)),      # encoder weights
                pl.BlockSpec((D, C), lambda i, k: (0, 0)),       # scaled text feats
                pl.BlockSpec((tm, 1), lambda i, k: (i, 0)),      # per-row cam mask
                pl.BlockSpec((bpt, CAM), lambda i, k: (i, 0)),   # per-box cam mask
                pl.BlockSpec((bpt, tm), lambda i, k: (0, 0)),    # aggregation matrix
            ],
            out_specs=(
                pl.BlockSpec((bpt, 1), lambda i, k: (i, 0)),     # pred_scores
                pl.BlockSpec((bpt, 1), lambda i, k: (i, 0)),     # pred_labels (0-based)
            ),
            scratch_shapes=[pltpu.VMEM((tm, D), jnp.float32)],
        ),
        compiler_params=pltpu.CompilerParams(
            dimension_semantics=("parallel", "arbitrary"),       # M parallel (2 TCs on v7x)
            vmem_limit_bytes=vmem_limit,
        ),
    )(crops_flat, w_pad, t_scaled_t, mask_col, mask2d, agg)

    pred_scores = scores[:N, 0]
    pred_labels = labels[:N, 0] + 1          # module relabels: pred_labels + 1
    return pred_scores, pred_labels


# --------------------------------------------------------------------------
# Pure-JAX reference (same bf16 encode matmul, f32 everywhere else)
# --------------------------------------------------------------------------
def reference_forward(crops, cam_mask, w_enc, text_features, logit_scale):
    N, cam = crops.shape[:2]
    x = crops.reshape(N * cam, -1).astype(jnp.bfloat16)
    feat = jnp.dot(x, w_enc.astype(jnp.bfloat16),
                   preferred_element_type=jnp.float32)
    feat = feat / jnp.linalg.norm(feat, axis=1, keepdims=True)
    t = text_features / jnp.linalg.norm(text_features, axis=1, keepdims=True)
    logits = feat @ (logit_scale[0] * t).T
    probs = jax.nn.softmax(logits, axis=-1).reshape(N, cam, -1)
    probs = probs * cam_mask[..., None]
    mean = probs.sum(axis=1) / (1e-5 + cam_mask.sum(axis=-1, keepdims=True))
    scores = jnp.nan_to_num(jnp.max(mean, axis=-1), nan=0.0)
    labels = jnp.argmax(mean, axis=-1) + 1
    return scores, labels


if __name__ == "__main__":
    key = jax.random.PRNGKey(0)
    k1, k2, k3, k4 = jax.random.split(key, 4)

    # Small, module-consistent shapes: 24 boxes, 6 cameras, 10 classes.
    N, C = 24, NUM_CLASSES
    H = W = 16                       # small stand-in for the 224x224 CLIP crops
    F = 3 * H * W                    # 768 -> 3 contraction tiles of tk=256
    D = 128                          # embedding dim (lane-dense)

    crops = jax.random.normal(k1, (N, CAM, 3, H, W), dtype=jnp.float32)
    cam_mask = jax.random.bernoulli(k2, 0.7, (N, CAM)).astype(jnp.float32)
    w_enc = jax.random.normal(k3, (F, D), dtype=jnp.float32) * 0.02
    text_features = jax.random.normal(k4, (C, D), dtype=jnp.float32)
    logit_scale = jnp.array([1.0 / 0.07], dtype=jnp.float32)   # exp(logit_scale)

    scores, labels = clip_box_classification_forward(
        crops, cam_mask, w_enc, text_features, logit_scale, tk=256)
    jax.block_until_ready((scores, labels))

    ref_scores, ref_labels = reference_forward(
        crops, cam_mask, w_enc, text_features, logit_scale)
    assert jnp.allclose(scores, ref_scores, atol=2e-2, rtol=2e-2), (scores, ref_scores)
    assert jnp.array_equal(labels, ref_labels), (labels, ref_labels)

    print("KERNEL_OK")
</pallas_src>

<mosaic_0001>
module attributes {stable_mosaic.version = 11 : i64} {
  func.func @clip_fused_kernel(%arg0: i32, %arg1: i32, %arg2: memref<144x256xbf16, #tpu.memory_space<vmem>>, %arg3: memref<256x128xbf16, #tpu.memory_space<vmem>>, %arg4: memref<128x10xf32, #tpu.memory_space<vmem>>, %arg5: memref<144x1xf32, #tpu.memory_space<vmem>>, %arg6: memref<24x6xf32, #tpu.memory_space<vmem>>, %arg7: memref<24x144xf32, #tpu.memory_space<vmem>>, %arg8: memref<24x1xf32, #tpu.memory_space<vmem>>, %arg9: memref<24x1xi32, #tpu.memory_space<vmem>>, %arg10: memref<144x128xf32, #tpu.memory_space<vmem>>) attributes {dimension_semantics = [#tpu.dimension_semantics<parallel>, #tpu.dimension_semantics<arbitrary>], iteration_bounds = array<i64: 1, 3>, scalar_prefetch = 0 : i64, scratch_operands = 1 : i64, tpu.core_type = #tpu.core_type<tc>, window_params = [{transform_indices = @transform_0, window_bounds = array<i64: 144, 256>}, {transform_indices = @transform_1, window_bounds = array<i64: 256, 128>}, {pipeline_mode = #tpu.pipeline_mode<synchronous>, transform_indices = @transform_2, window_bounds = array<i64: 128, 10>}, {transform_indices = @transform_3, window_bounds = array<i64: 144, 1>}, {transform_indices = @transform_4, window_bounds = array<i64: 24, 6>}, {pipeline_mode = #tpu.pipeline_mode<synchronous>, transform_indices = @transform_5, window_bounds = array<i64: 24, 144>}, {transform_indices = @transform_6, window_bounds = array<i64: 24, 1>}, {transform_indices = @transform_7, window_bounds = array<i64: 24, 1>}]} {
    %c0_i32 = arith.constant 0 : i32
    %0 = arith.cmpi eq, %arg1, %c0_i32 : i32
    %1 = arith.extui %0 : i1 to i32
    %c0_i32_0 = arith.constant 0 : i32
    %2 = arith.cmpi ne, %1, %c0_i32_0 : i32
    scf.if %2 {
      %cst_9 = arith.constant 0.000000e+00 : f32
      %12 = vector.broadcast %cst_9 : f32 to vector<144x128xf32>
      %c0_10 = arith.constant 0 : index
      %c0_11 = arith.constant 0 : index
      %13 = vector.load %arg10[%c0_10, %c0_11] : memref<144x128xf32, #tpu.memory_space<vmem>>, vector<144x128xf32>
      tpu.vector_store %arg10[%c0_10, %c0_11], %12 {strides = array<i32>} : memref<144x128xf32, #tpu.memory_space<vmem>>, vector<144x128xf32>,
    } else {
    }
    %c0 = arith.constant 0 : index
    %c0_1 = arith.constant 0 : index
    %3 = vector.load %arg10[%c0, %c0_1] : memref<144x128xf32, #tpu.memory_space<vmem>>, vector<144x128xf32>
    %c0_2 = arith.constant 0 : index
    %c0_3 = arith.constant 0 : index
    %4 = vector.load %arg2[%c0_2, %c0_3] : memref<144x256xbf16, #tpu.memory_space<vmem>>, vector<144x256xbf16>
    %c0_4 = arith.constant 0 : index
    %c0_5 = arith.constant 0 : index
    %5 = vector.load %arg3[%c0_4, %c0_5] : memref<256x128xbf16, #tpu.memory_space<vmem>>, vector<256x128xbf16>
    %cst = arith.constant dense<0.000000e+00> : vector<144x128xf32>
    %6 = tpu.matmul %4, %5, %cst {dimension_numbers = #tpu.dot_dimension_numbers<[1], [0], [0], [1], [0, 0, 1, 1], [], []>} : vector<144x256xbf16>, vector<256x128xbf16>, vector<144x128xf32> -> vector<144x128xf32>
    %7 = arith.addf %3, %6 : vector<144x128xf32>
    %c0_6 = arith.constant 0 : index
    %c0_7 = arith.constant 0 : index
    %8 = vector.load %arg10[%c0_6, %c0_7] : memref<144x128xf32, #tpu.memory_space<vmem>>, vector<144x128xf32>
    tpu.vector_store %arg10[%c0_6, %c0_7], %7 {strides = array<i32>} : memref<144x128xf32, #tpu.memory_space<vmem>>, vector<144x128xf32>,
    %c2_i32 = arith.constant 2 : i32
    %9 = arith.cmpi eq, %arg1, %c2_i32 : i32
    %10 = arith.extui %9 : i1 to i32
    %c0_i32_8 = arith.constant 0 : i32
    %11 = arith.cmpi ne, %10, %c0_i32_8 : i32
    scf.if %11 {
      %c0_9 = arith.constant 0 : index
      %c0_10 = arith.constant 0 : index
      %12 = vector.load %arg10[%c0_9, %c0_10] : memref<144x128xf32, #tpu.memory_space<vmem>>, vector<144x128xf32>
      %13 = arith.mulf %12, %12 : vector<144x128xf32>
      %cst_11 = arith.constant dense<0.000000e+00> : vector<144xf32>
      %14 = vector.multi_reduction <add>, %13, %cst_11 [1] : vector<144x128xf32> to vector<144xf32>
      %15 = vector.shape_cast %14 : vector<144xf32> to vector<144x1xf32>
      %cst_12 = arith.constant 9.99999996E-13 : f32
      %16 = vector.broadcast %cst_12 : f32 to vector<144x1xf32>
      %17 = arith.addf %15, %16 : vector<144x1xf32>
      %18 = math.rsqrt %17 : vector<144x1xf32>
      %19 = vector.broadcast %18 : vector<144x1xf32> to vector<144x128xf32>
      %20 = arith.mulf %12, %19 : vector<144x128xf32>
      %c0_13 = arith.constant 0 : index
      %c0_14 = arith.constant 0 : index
      %21 = vector.load %arg4[%c0_13, %c0_14] : memref<128x10xf32, #tpu.memory_space<vmem>>, vector<128x10xf32>
      %cst_15 = arith.constant dense<0.000000e+00> : vector<144x10xf32>
      %22 = tpu.matmul %20, %21, %cst_15 {dimension_numbers = #tpu.dot_dimension_numbers<[1], [0], [0], [1], [0, 0, 1, 1], [], []>} : vector<144x128xf32>, vector<128x10xf32>, vector<144x10xf32> -> vector<144x10xf32>
      %cst_16 = arith.constant dense<0xFF800000> : vector<144xf32>
      %23 = vector.multi_reduction <maximumf>, %22, %cst_16 [1] : vector<144x10xf32> to vector<144xf32>
      %24 = vector.shape_cast %23 : vector<144xf32> to vector<144x1xf32>
      %25 = vector.broadcast %24 : vector<144x1xf32> to vector<144x10xf32>
      %26 = arith.subf %22, %25 : vector<144x10xf32>
      %27 = math.exp %26 : vector<144x10xf32>
      %cst_17 = arith.constant dense<0.000000e+00> : vector<144xf32>
      %28 = vector.multi_reduction <add>, %27, %cst_17 [1] : vector<144x10xf32> to vector<144xf32>
      %29 = vector.shape_cast %28 : vector<144xf32> to vector<144x1xf32>
      %30 = vector.broadcast %29 : vector<144x1xf32> to vector<144x10xf32>
      %31 = arith.divf %27, %30 : vector<144x10xf32>
      %c0_18 = arith.constant 0 : index
      %c0_19 = arith.constant 0 : index
      %32 = vector.load %arg5[%c0_18, %c0_19] : memref<144x1xf32, #tpu.memory_space<vmem>>, vector<144x1xf32>
      %33 = vector.broadcast %32 : vector<144x1xf32> to vector<144x10xf32>
      %34 = arith.mulf %31, %33 : vector<144x10xf32>
      %c0_20 = arith.constant 0 : index
      %c0_21 = arith.constant 0 : index
      %35 = vector.load %arg7[%c0_20, %c0_21] : memref<24x144xf32, #tpu.memory_space<vmem>>, vector<24x144xf32>
      %cst_22 = arith.constant dense<0.000000e+00> : vector<24x10xf32>
      %36 = tpu.matmul %35, %34, %cst_22 {dimension_numbers = #tpu.dot_dimension_numbers<[1], [0], [0], [1], [0, 0, 1, 1], [], []>} : vector<24x144xf32>, vector<144x10xf32>, vector<24x10xf32> -> vector<24x10xf32>
      %c0_23 = arith.constant 0 : index
      %c0_24 = arith.constant 0 : index
      %37 = vector.load %arg6[%c0_23, %c0_24] : memref<24x6xf32, #tpu.memory_space<vmem>>, vector<24x6xf32>
      %cst_25 = arith.constant dense<0.000000e+00> : vector<24xf32>
      %38 = vector.multi_reduction <add>, %37, %cst_25 [1] : vector<24x6xf32> to vector<24xf32>
      %39 = vector.shape_cast %38 : vector<24xf32> to vector<24x1xf32>
      %cst_26 = arith.constant 9.99999974E-6 : f32
      %40 = vector.broadcast %cst_26 : f32 to vector<24x1xf32>
      %41 = arith.addf %40, %39 : vector<24x1xf32>
      %42 = vector.broadcast %41 : vector<24x1xf32> to vector<24x10xf32>
      %43 = arith.divf %36, %42 : vector<24x10xf32>
      %cst_27 = arith.constant dense<0xFF800000> : vector<24xf32>
      %44 = vector.multi_reduction <maximumf>, %43, %cst_27 [1] : vector<24x10xf32> to vector<24xf32>
      %45 = vector.shape_cast %44 : vector<24xf32> to vector<24x1xf32>
      %46 = tpu.iota {dimensions = array<i32: 1>} : vector<24x10xi32>
      %47 = vector.broadcast %45 : vector<24x1xf32> to vector<24x10xf32>
      %48 = arith.cmpf oeq, %43, %47 : vector<24x10xf32>
      %c10_i32 = arith.constant 10 : i32
      %49 = vector.broadcast %c10_i32 : i32 to vector<24x10xi32>
      %50 = arith.select %48, %46, %49 : vector<24x10xi1>, vector<24x10xi32>
      %cst_28 = arith.constant dense<2147483647> : vector<24xi32>
      %51 = vector.multi_reduction <minsi>, %50, %cst_28 [1] : vector<24x10xi32> to vector<24xi32>
      %52 = vector.shape_cast %51 : vector<24xi32> to vector<24x1xi32>
      %c10_i32_29 = arith.constant 10 : i32
      %53 = vector.broadcast %c10_i32_29 : i32 to vector<24x1xi32>
      %54 = arith.cmpi sge, %52, %53 : vector<24x1xi32>
      %c0_i32_30 = arith.constant 0 : i32
      %55 = vector.broadcast %c0_i32_30 : i32 to vector<24x1xi32>
      %56 = arith.select %54, %55, %52 : vector<24x1xi1>, vector<24x1xi32>
      %57 = arith.cmpf one, %45, %45 : vector<24x1xf32>
      %cst_31 = arith.constant 0.000000e+00 : f32
      %58 = vector.broadcast %cst_31 : f32 to vector<24x1xf32>
      %59 = arith.select %57, %58, %45 : vector<24x1xi1>, vector<24x1xf32>
      %c0_32 = arith.constant 0 : index
      %c0_33 = arith.constant 0 : index
      %60 = vector.load %arg8[%c0_32, %c0_33] : memref<24x1xf32, #tpu.memory_space<vmem>>, vector<24x1xf32>
      tpu.vector_store %arg8[%c0_32, %c0_33], %59 {strides = array<i32>} : memref<24x1xf32, #tpu.memory_space<vmem>>, vector<24x1xf32>,
      %c0_34 = arith.constant 0 : index
      %c0_35 = arith.constant 0 : index
      %61 = vector.load %arg9[%c0_34, %c0_35] : memref<24x1xi32, #tpu.memory_space<vmem>>, vector<24x1xi32>
      tpu.vector_store %arg9[%c0_34, %c0_35], %56 {strides = array<i32>} : memref<24x1xi32, #tpu.memory_space<vmem>>, vector<24x1xi32>,
    } else {
    }
    return
  }
  func.func @transform_0(%arg0: i32, %arg1: i32) -> (i32, i32) {
    %c0_i32 = arith.constant 0 : i32
    return %arg0, %arg1 : i32, i32
  }
  func.func @transform_1(%arg0: i32, %arg1: i32) -> (i32, i32) {
    %c0_i32 = arith.constant 0 : i32
    %c0_i32_0 = arith.constant 0 : i32
    return %arg1, %c0_i32 : i32, i32
  }
  func.func @transform_2(%arg0: i32, %arg1: i32) -> (i32, i32) {
    %c0_i32 = arith.constant 0 : i32
    %c0_i32_0 = arith.constant 0 : i32
    %c0_i32_1 = arith.constant 0 : i32
    return %c0_i32, %c0_i32_0 : i32, i32
  }
  func.func @transform_3(%arg0: i32, %arg1: i32) -> (i32, i32) {
    %c0_i32 = arith.constant 0 : i32
    %c0_i32_0 = arith.constant 0 : i32
    return %arg0, %c0_i32 : i32, i32
  }
  func.func @transform_4(%arg0: i32, %arg1: i32) -> (i32, i32) {
    %c0_i32 = arith.constant 0 : i32
    %c0_i32_0 = arith.constant 0 : i32
    return %arg0, %c0_i32 : i32, i32
  }
  func.func @transform_5(%arg0: i32, %arg1: i32) -> (i32, i32) {
    %c0_i32 = arith.constant 0 : i32
    %c0_i32_0 = arith.constant 0 : i32
    %c0_i32_1 = arith.constant 0 : i32
    return %c0_i32, %c0_i32_0 : i32, i32
  }
  func.func @transform_6(%arg0: i32, %arg1: i32) -> (i32, i32) {
    %c0_i32 = arith.constant 0 : i32
    %c0_i32_0 = arith.constant 0 : i32
    return %arg0, %c0_i32 : i32, i32
  }
  func.func @transform_7(%arg0: i32, %arg1: i32) -> (i32, i32) {
    %c0_i32 = arith.constant 0 : i32
    %c0_i32_0 = arith.constant 0 : i32
    return %arg0, %c0_i32 : i32, i32
  }
}

</mosaic_0001>

<llo_original>
// kernel: clip_box_classification_forward.1
$region0: #{clip_box_classification_forward.1}
  #allocation0 [shape = 'u32[]', space=smem, size = 0x4, offset = 0x4, fixed_abs, tag = 'smem constant byte address 0x4 - core index']
  #allocation1 [shape = 'u32[72,128]{1,0:T(1,128)}', space=vmem, size = 0x9000, scoped, tag = 'internal scratch']
  #allocation2 [shape = 'f32[144,128]{1,0:T(8,128)}', space=vmem, size = 0x12000, scoped, tag = 'scratch operand']
  %s0 = inlined_call_operand.vmem [shape: bf16[144,768], index: 0, kind: input, shape index: {}]
  %s1 = inlined_call_operand.vmem [shape: bf16[768,128], index: 1, kind: input, shape index: {}]
  %s2 = inlined_call_operand.vmem [shape: f32[128,10], index: 2, kind: input, shape index: {}]
  %s3 = inlined_call_operand.vmem [shape: f32[144,1], index: 3, kind: input, shape index: {}]
  %s4 = inlined_call_operand.vmem [shape: f32[24,6], index: 4, kind: input, shape index: {}]
  %s5 = inlined_call_operand.vmem [shape: f32[24,144], index: 5, kind: input, shape index: {}]
  %s6 = inlined_call_operand.vmem [shape: f32[24,1], index: 6, kind: output, shape index: {0}]
  %s7 = inlined_call_operand.vmem [shape: s32[24,1], index: 7, kind: output, shape index: {1}]
  %8 = xla_tuple %s6, %s7
  %s9 = sld [smem:[#allocation0]]
  $region111: #{clip_box_classification_forward.1} parent=0
    _
  %s11 = ssub.s32 1, %s9
  %s12 = scalar_select 0, %s11, %s9
  $region1: #{clip_box_classification_forward.1} parent=0
    #allocation3 [shape = 'u8[147456]{0}', space=vmem, size = 0x24000, scoped, tag = 'input window, operand 0']
    loop: start=0, step=1, limit=5
    $region2: #{clip_box_classification_forward.1} parent=1 // loop_pre_header
      _
    $region3: #{clip_box_classification_forward.1} parent=1 // loop_header
      %s14 = sphi 0, %s18
      %p15 = scmp.ge.s32.totalorder %s14, 5
      %s21 = sphi 0, %s33
      %s22 = sphi 0, %s29
      %s23 = sphi 0, %s21
      %s24 = sphi 0, %s22
      %s25 = sphi 0, %s23
      %s26 = sphi 0, %s24
      %s38 = sphi 0, %s40
      %s41 = sphi 0, %s38
      %s42 = sphi 0, %s41
      %s58 = sphi 0, %s42
      %s64 = sphi 0, %s66
      %s67 = sphi 0, %s64
      %s68 = sphi 0, %s67
      %s84 = sphi 0, %s68
      %s88 = sphi 0, %s88
      %s90 = sphi 0, %s88
      %s91 = sphi 0, %s90
      %s105 = sphi 0, %s91
      %s111 = sphi 0, %s113
      %s114 = sphi 0, %s111
      %s115 = sphi 0, %s114
      %s131 = sphi 0, %s115
      %s137 = sphi 0, %s139
      %s140 = sphi 0, %s137
      %s141 = sphi 0, %s140
      %s157 = sphi 0, %s141
      %s161 = sphi 0, %s161
      %s163 = sphi 0, %s161
      %s164 = sphi 0, %s163
      %s178 = sphi 0, %s164
      %s184 = sphi 0, %s186
      %s187 = sphi 0, %s184
      %s188 = sphi 0, %s187
      %s204 = sphi 0, %s188
      %s210 = sphi 0, %s212
      %s213 = sphi 0, %s210
      %s214 = sphi 0, %s213
      %s230 = sphi 0, %s214
    $region4: #{clip_box_classification_forward.1} parent=1 // loop_header_branch
      %17 = sbr.rel (%p15) target = $region8
    $region5: #{clip_box_classification_forward.1} parent=1 // loop_body
      %s19 = ssub.s32 %s14, 1
      %s20 = ssub.s32 %s14, 2
      %s27 = sadd.s32 1, %s22
      %p28 = scmp.ge.s32.totalorder %s27, 3
      %s29 = scalar_select %p28, 0, %s27
      %s30 = sadd.s32 1, %s21
      %s31 = scalar_select %p28, %s30, %s21
      %p32 = scmp.ge.s32.totalorder %s31, 1
      %s33 = scalar_select %p32, 0, %s31
      %s34 = ssub.s32 %s21, %s33
      %s35 = ssub.s32 %s22, %s29
      %s36 = sor.u32 %s34, %s35
      %p37 = scmp.eq.s32.totalorder %s36, 0
      %s39 = sadd.s32 %s38, 1
      %s40 = scalar_select %p37, %s38, %s39
      %p43 = pneg %p37
      %p44 = scmp.eq.s32.totalorder %s14, 2
      %p45 = por %p43, %p44
      %p46 = scmp.ne.s32.totalorder %s38, %s41
      %p47 = scmp.eq.s32.totalorder %s14, 0
      %p48 = por %p46, %p47
      %p49 = scmp.ne.s32.totalorder %s38, %s41
      %p50 = scmp.eq.s32.totalorder %s19, 2
      %p51 = por %p49, %p50
      %p52 = scmp.ne.s32.totalorder %s41, %s42
      %p53 = scmp.eq.s32.totalorder %s19, 0
      %p54 = por %p52, %p53
      %p55 = scmp.ne.s32.totalorder %s41, %s42
      %p56 = scmp.eq.s32.totalorder %s20, 2
      %p57 = por %p55, %p56
      %p59 = scmp.ne.s32.totalorder %s42, %s58
      %p60 = scmp.eq.s32.totalorder %s20, 0
      %p61 = por %p59, %p60
      %s62 = ssub.s32 %s22, %s29
      %p63 = scmp.eq.s32.totalorder %s62, 0
      %s65 = sadd.s32 %s64, 1
      %s66 = scalar_select %p63, %s64, %s65
      %p69 = pneg %p63
      %p70 = scmp.eq.s32.totalorder %s14, 2
      %p71 = por %p69, %p70
      %p72 = scmp.ne.s32.totalorder %s64, %s67
      %p73 = scmp.eq.s32.totalorder %s14, 0
      %p74 = por %p72, %p73
      %p75 = scmp.ne.s32.totalorder %s64, %s67
      %p76 = scmp.eq.s32.totalorder %s19, 2
      %p77 = por %p75, %p76
      %p78 = scmp.ne.s32.totalorder %s67, %s68
      %p79 = scmp.eq.s32.totalorder %s19, 0
      %p80 = por %p78, %p79
      %p81 = scmp.ne.s32.totalorder %s67, %s68
      %p82 = scmp.eq.s32.totalorder %s20, 2
      %p83 = por %p81, %p82
      %p85 = scmp.ne.s32.totalorder %s68, %s84
      %p86 = scmp.eq.s32.totalorder %s20, 0
      %p87 = por %p85, %p86
      %s89 = sadd.s32 %s88, 1
      %p92 = scmp.eq.s32.totalorder %s14, 2
      %p93 = scmp.ne.s32.totalorder %s88, %s90
      %p94 = scmp.eq.s32.totalorder %s14, 0
      %p95 = por %p93, %p94
      %p96 = scmp.ne.s32.totalorder %s88, %s90
      %p97 = scmp.eq.s32.totalorder %s19, 2
      %p98 = por %p96, %p97
      %p99 = scmp.ne.s32.totalorder %s90, %s91
      %p100 = scmp.eq.s32.totalorder %s19, 0
      %p101 = por %p99, %p100
      %p102 = scmp.ne.s32.totalorder %s90, %s91
      %p103 = scmp.eq.s32.totalorder %s20, 2
      %p104 = por %p102, %p103
      %p106 = scmp.ne.s32.totalorder %s91, %s105
      %p107 = scmp.eq.s32.totalorder %s20, 0
      %p108 = por %p106, %p107
      %s109 = ssub.s32 %s21, %s33
      %p110 = scmp.eq.s32.totalorder %s109, 0
      %s112 = sadd.s32 %s111, 1
      %s113 = scalar_select %p110, %s111, %s112
      %p116 = pneg %p110
      %p117 = scmp.eq.s32.totalorder %s14, 2
      %p118 = por %p116, %p117
      %p119 = scmp.ne.s32.totalorder %s111, %s114
      %p120 = scmp.eq.s32.totalorder %s14, 0
      %p121 = por %p119, %p120
      %p122 = scmp.ne.s32.totalorder %s111, %s114
      %p123 = scmp.eq.s32.totalorder %s19, 2
      %p124 = por %p122, %p123
      %p125 = scmp.ne.s32.totalorder %s114, %s115
      %p126 = scmp.eq.s32.totalorder %s19, 0
      %p127 = por %p125, %p126
      %p128 = scmp.ne.s32.totalorder %s114, %s115
      %p129 = scmp.eq.s32.totalorder %s20, 2
      %p130 = por %p128, %p129
      %p132 = scmp.ne.s32.totalorder %s115, %s131
      %p133 = scmp.eq.s32.totalorder %s20, 0
      %p134 = por %p132, %p133
      %s135 = ssub.s32 %s21, %s33
      %p136 = scmp.eq.s32.totalorder %s135, 0
      %s138 = sadd.s32 %s137, 1
      %s139 = scalar_select %p136, %s137, %s138
      %p142 = pneg %p136
      %p143 = scmp.eq.s32.totalorder %s14, 2
      %p144 = por %p142, %p143
      %p145 = scmp.ne.s32.totalorder %s137, %s140
      %p146 = scmp.eq.s32.totalorder %s14, 0
      %p147 = por %p145, %p146
      %p148 = scmp.ne.s32.totalorder %s137, %s140
      %p149 = scmp.eq.s32.totalorder %s19, 2
      %p150 = por %p148, %p149
      %p151 = scmp.ne.s32.totalorder %s140, %s141
      %p152 = scmp.eq.s32.totalorder %s19, 0
      %p153 = por %p151, %p152
      %p154 = scmp.ne.s32.totalorder %s140, %s141
      %p155 = scmp.eq.s32.totalorder %s20, 2
      %p156 = por %p154, %p155
      %p158 = scmp.ne.s32.totalorder %s141, %s157
      %p159 = scmp.eq.s32.totalorder %s20, 0
      %p160 = por %p158, %p159
      %s162 = sadd.s32 %s161, 1
      %p165 = scmp.eq.s32.totalorder %s14, 2
      %p166 = scmp.ne.s32.totalorder %s161, %s163
      %p167 = scmp.eq.s32.totalorder %s14, 0
      %p168 = por %p166, %p167
      %p169 = scmp.ne.s32.totalorder %s161, %s163
      %p170 = scmp.eq.s32.totalorder %s19, 2
      %p171 = por %p169, %p170
      %p172 = scmp.ne.s32.totalorder %s163, %s164
      %p173 = scmp.eq.s32.totalorder %s19, 0
      %p174 = por %p172, %p173
      %p175 = scmp.ne.s32.totalorder %s163, %s164
      %p176 = scmp.eq.s32.totalorder %s20, 2
      %p177 = por %p175, %p176
      %p179 = scmp.ne.s32.totalorder %s164, %s178
      %p180 = scmp.eq.s32.totalorder %s20, 0
      %p181 = por %p179, %p180
      %s182 = ssub.s32 %s21, %s33
      %p183 = scmp.eq.s32.totalorder %s182, 0
      %s185 = sadd.s32 %s184, 1
      %s186 = scalar_select %p183, %s184, %s185
      %p189 = pneg %p183
      %p190 = scmp.eq.s32.totalorder %s14, 2
      %p191 = por %p189, %p190
      %p192 = scmp.ne.s32.totalorder %s184, %s187
      %p193 = scmp.eq.s32.totalorder %s14, 0
      %p194 = por %p192, %p193
      %p195 = scmp.ne.s32.totalorder %s184, %s187
      %p196 = scmp.eq.s32.totalorder %s19, 2
      %p197 = por %p195, %p196
      %p198 = scmp.ne.s32.totalorder %s187, %s188
      %p199 = scmp.eq.s32.totalorder %s19, 0
      %p200 = por %p198, %p199
      %p201 = scmp.ne.s32.totalorder %s187, %s188
      %p202 = scmp.eq.s32.totalorder %s20, 2
      %p203 = por %p201, %p202
      %p205 = scmp.ne.s32.totalorder %s188, %s204
      %p206 = scmp.eq.s32.totalorder %s20, 0
      %p207 = por %p205, %p206
      %s208 = ssub.s32 %s21, %s33
      %p209 = scmp.eq.s32.totalorder %s208, 0
      %s211 = sadd.s32 %s210, 1
      %s212 = scalar_select %p209, %s210, %s211
      %p215 = pneg %p209
      %p216 = scmp.eq.s32.totalorder %s14, 2
      %p217 = por %p215, %p216
      %p218 = scmp.ne.s32.totalorder %s210, %s213
      %p219 = scmp.eq.s32.totalorder %s14, 0
      %p220 = por %p218, %p219
      %p221 = scmp.ne.s32.totalorder %s210, %s213
      %p222 = scmp.eq.s32.totalorder %s19, 2
      %p223 = por %p221, %p222
      %p224 = scmp.ne.s32.totalorder %s213, %s214
      %p225 = scmp.eq.s32.totalorder %s19, 0
      %p226 = por %p224, %p225
      %p227 = scmp.ne.s32.totalorder %s213, %s214
      %p228 = scmp.eq.s32.totalorder %s20, 2
      %p229 = por %p227, %p228
      %p231 = scmp.ne.s32.totalorder %s214, %s230
      %p232 = scmp.eq.s32.totalorder %s20, 0
      %p233 = por %p231, %p232
      %p234 = scmp.le.s32.totalorder 1, %s14
      %p235 = scmp.lt.s32.totalorder %s14, 4
      %p236 = pnand %p234, %p235
      %p237 = pneg %p236
      // Predicated region
      $region9: #{clip_box_classification_forward.1} parent=5 // pred_check
        _
      $region10: #{clip_box_classification_forward.1} parent=5 // pred_check_branch
        %239 = sbr.rel (%p236) target = $region12
      $region11: #{clip_box_classification_forward.1} parent=5 // pred_region
        %s240 = ssub.s32 %s14, 1
        // Predicated region
        $region13: #{clip_box_classification_forward.1} parent=11 // pred_check
          %p241 = pneg %p101
        $region14: #{clip_box_classification_forward.1} parent=11 // pred_check_branch
          %243 = sbr.rel (%p241) target = $region16
        $region15: #{clip_box_classification_forward.1} parent=11 // pred_region
          _
        $region16: #{clip_box_classification_forward.1} parent=11 // pred_fallthru
          _
        // Predicated region
        $region17: #{clip_box_classification_forward.1} parent=11 // pred_check
          %p244 = pneg %p127
        $region18: #{clip_box_classification_forward.1} parent=11 // pred_check_branch
          %246 = sbr.rel (%p244) target = $region20
        $region19: #{clip_box_classification_forward.1} parent=11 // pred_region
          %s247 = smul.u32 18, %s23
          %p248 = scmp.lt.s32.totalorder %s247, 17
          %s249 = scalar_select %p248, %s247, 17
          %s250 = smul.addr %s249, 8
          %s251 = scalar_lea.vmem %s3, %s250
          %s252 = smul.u32 18, %s23
        $region20: #{clip_box_classification_forward.1} parent=11 // pred_fallthru
          _
        // Predicated region
        $region21: #{clip_box_classification_forward.1} parent=11 // pred_check
          %p253 = pneg %p153
        $region22: #{clip_box_classification_forward.1} parent=11 // pred_check_branch
          %255 = sbr.rel (%p253) target = $region24
        $region23: #{clip_box_classification_forward.1} parent=11 // pred_region
          %s256 = smul.u32 3, %s23
          %p257 = scmp.lt.s32.totalorder %s256, 2
          %s258 = scalar_select %p257, %s256, 2
          %s259 = smul.addr %s258, 8
          %s260 = scalar_lea.vmem %s4, %s259
          %s261 = smul.u32 3, %s23
        $region24: #{clip_box_classification_forward.1} parent=11 // pred_fallthru
          _
        // Predicated region
        $region25: #{clip_box_classification_forward.1} parent=11 // pred_check
          %p262 = pneg %p174
        $region26: #{clip_box_classification_forward.1} parent=11 // pred_check_branch
          %264 = sbr.rel (%p262) target = $region28
        $region27: #{clip_box_classification_forward.1} parent=11 // pred_region
          _
        $region28: #{clip_box_classification_forward.1} parent=11 // pred_fallthru
          _
      $region12: #{clip_box_classification_forward.1} parent=5 // pred_fallthru
        _
      %p265 = scmp.lt.s32.totalorder %s14, 3
      // Predicated region
      $region29: #{clip_box_classification_forward.1} parent=5 // pred_check
        %p266 = pneg %p265
      $region30: #{clip_box_classification_forward.1} parent=5 // pred_check_branch
        %268 = sbr.rel (%p266) target = $region32
      $region31: #{clip_box_classification_forward.1} parent=5 // pred_region
        // Predicated region
        $region33: #{clip_box_classification_forward.1} parent=31 // pred_check
          %p269 = pneg %p48
        $region34: #{clip_box_classification_forward.1} parent=31 // pred_check_branch
          %271 = sbr.rel (%p269) target = $region36
        $region35: #{clip_box_classification_forward.1} parent=31 // pred_region
          %s272 = sand.u32 %s38, 1
          %s273 = sand.u32 %s38, 1
          %s274 = smul.addr %s273, 144
          %s275 = scalar_lea.vmem [#allocation3], %s274
          %s276 = smul.u32 18, %s21
          %s277 = smul.u32 2, %s22
          %s278 = smul.addr %s276, 6
          %s279 = sadd.s32 %s277, %s278
          %s280 = smul.addr %s279, 4
          %s281 = scalar_lea.vmem %s0, %s280
          // Predicated region
          $region37: #{clip_box_classification_forward.1} parent=35 // pred_check
            _
          $region38: #{clip_box_classification_forward.1} parent=35 // pred_check_branch
            %283 = sbr.rel (0) target = $region40
          $region39: #{clip_box_classification_forward.1} parent=35 // pred_region
            // Predicated region
            $region41: #{clip_box_classification_forward.1} parent=39 // pred_check
              _
            $region42: #{clip_box_classification_forward.1} parent=39 // pred_check_branch
              %285 = sbr.rel (0) target = $region44
            $region43: #{clip_box_classification_forward.1} parent=39 // pred_region
              // Predicated region
              $region56: #{clip_box_classification_forward.1} parent=43 // pred_check
                _
              $region57: #{clip_box_classification_forward.1} parent=43 // pred_check_branch
                %335 = sbr.rel (0) target = $region59
              $region58: #{clip_box_classification_forward.1} parent=43 // pred_region
                loop: start=0, step=1, limit=1
                $region60: #{clip_box_classification_forward.1} parent=58 // loop_pre_header
                  _
                $region61: #{clip_box_classification_forward.1} parent=58 // loop_header
                  %s337 = sphi 0, %s341
                  %p338 = scmp.ge.s32.totalorder %s337, 1
                  %s342 = sphi %s281, %s281
                  %s343 = sphi %s275, %s275
                $region62: #{clip_box_classification_forward.1} parent=58 // loop_header_branch
                  %340 = sbr.rel (%p338) target = $region66
                $region63: #{clip_box_classification_forward.1} parent=58 // loop_body
                  %v344 = vld [vmem:[%s342] sm:$0xff]
                  %345 = vst [vmem:[%s343] sm:$0xff] %v344
                  %v346 = vld [vmem:[%s342 + $0x18] sm:$0xff]
                  %347 = vst [vmem:[%s343 + $0x8] sm:$0xff] %v346
                  %v348 = vld [vmem:[%s342 + $0x30] sm:$0xff]
                  %349 = vst [vmem:[%s343 + $0x10] sm:$0xff] %v348
                  %v350 = vld [vmem:[%s342 + $0x48] sm:$0xff]
                  %351 = vst [vmem:[%s343 + $0x18] sm:$0xff] %v350
                  %v352 = vld [vmem:[%s342 + $0x60] sm:$0xff]
                  %353 = vst [vmem:[%s343 + $0x20] sm:$0xff] %v352
                  %v354 = vld [vmem:[%s342 + $0x78] sm:$0xff]
                  %355 = vst [vmem:[%s343 + $0x28] sm:$0xff] %v354
                  %v356 = vld [vmem:[%s342 + $0x90] sm:$0xff]
                  %357 = vst [vmem:[%s343 + $0x30] sm:$0xff] %v356
                  %v358 = vld [vmem:[%s342 + $0xa8] sm:$0xff]
                  %359 = vst [vmem:[%s343 + $0x38] sm:$0xff] %v358
                  %v360 = vld [vmem:[%s342 + $0xc0] sm:$0xff]
                  %361 = vst [vmem:[%s343 + $0x40] sm:$0xff] %v360
                  %v362 = vld [vmem:[%s342 + $0xd8] sm:$0xff]
                  %363 = vst [vmem:[%s343 + $0x48] sm:$0xff] %v362
                  %v364 = vld [vmem:[%s342 + $0xf0] sm:$0xff]
                  %365 = vst [vmem:[%s343 + $0x50] sm:$0xff] %v364
                  %v366 = vld [vmem:[%s342 + $0x108] sm:$0xff]
                  %367 = vst [vmem:[%s343 + $0x58] sm:$0xff] %v366
                  %v368 = vld [vmem:[%s342 + $0x120] sm:$0xff]
                  %369 = vst [vmem:[%s343 + $0x60] sm:$0xff] %v368
                  %v370 = vld [vmem:[%s342 + $0x138] sm:$0xff]
                  %371 = vst [vmem:[%s343 + $0x68] sm:$0xff] %v370
                  %v372 = vld [vmem:[%s342 + $0x150] sm:$0xff]
                  %373 = vst [vmem:[%s343 + $0x70] sm:$0xff] %v372
                  %v374 = vld [vmem:[%s342 + $0x168] sm:$0xff]
                  %375 = vst [vmem:[%s343 + $0x78] sm:$0xff] %v374
                  %v376 = vld [vmem:[%s342 + $0x180] sm:$0xff]
                  %377 = vst [vmem:[%s343 + $0x80] sm:$0xff] %v376
                  %v378 = vld [vmem:[%s342 + $0x198] sm:$0xff]
                  %379 = vst [vmem:[%s343 + $0x88] sm:$0xff] %v378
                $region64: #{clip_box_classification_forward.1} parent=58 // loop_footer
                  %s341 = sadd.s32 1, %s337
                $region65: #{clip_box_classification_forward.1} parent=58 // loop_footer_branch
                  %336 = sbr.rel target = $region61
                $region66: #{clip_box_classification_forward.1} parent=58 // loop_exit
                  _
              $region59: #{clip_box_classification_forward.1} parent=43 // pred_fallthru
                _
              // Predicated region
              $region67: #{clip_box_classification_forward.1} parent=43 // pred_check
                _
              $region68: #{clip_box_classification_forward.1} parent=43 // pred_check_branch
                %381 = sbr.rel target = $region70
              $region69: #{clip_box_classification_forward.1} parent=43 // pred_region
                _
              $region70: #{clip_box_classification_forward.1} parent=43 // pred_fallthru
                _
            $region44: #{clip_box_classification_forward.1} parent=39 // pred_fallthru
              _
            // Predicated region
            $region45: #{clip_box_classification_forward.1} parent=39 // pred_check
              _
            $region46: #{clip_box_classification_forward.1} parent=39 // pred_check_branch
              %287 = sbr.rel target = $region48
            $region47: #{clip_box_classification_forward.1} parent=39 // pred_region
              %s289 = ssub.s32 256, 1
              loop: start=0, step=1, limit=1
              $region49: #{clip_box_classification_forward.1} parent=47 // loop_pre_header
                _
              $region50: #{clip_box_classification_forward.1} parent=47 // loop_header
                %s291 = sphi 0, %s295
                %p292 = scmp.ge.s32.totalorder %s291, 1
                %s296 = sphi %s281, %s281
                %s297 = sphi %s275, %s275
              $region51: #{clip_box_classification_forward.1} parent=47 // loop_header_branch
                %294 = sbr.rel (%p292) target = $region55
              $region52: #{clip_box_classification_forward.1} parent=47 // loop_body
                %v298 = vld [vmem:[%s296] sm:%s289]
                %299 = vst [vmem:[%s297] sm:%s289] %v298
                %v300 = vld [vmem:[%s296 + $0x18] sm:%s289]
                %301 = vst [vmem:[%s297 + $0x8] sm:%s289] %v300
                %v302 = vld [vmem:[%s296 + $0x30] sm:%s289]
                %303 = vst [vmem:[%s297 + $0x10] sm:%s289] %v302
                %v304 = vld [vmem:[%s296 + $0x48] sm:%s289]
                %305 = vst [vmem:[%s297 + $0x18] sm:%s289] %v304
                %v306 = vld [vmem:[%s296 + $0x60] sm:%s289]
                %307 = vst [vmem:[%s297 + $0x20] sm:%s289] %v306
                %v308 = vld [vmem:[%s296 + $0x78] sm:%s289]
                %309 = vst [vmem:[%s297 + $0x28] sm:%s289] %v308
                %v310 = vld [vmem:[%s296 + $0x90] sm:%s289]
                %311 = vst [vmem:[%s297 + $0x30] sm:%s289] %v310
                %v312 = vld [vmem:[%s296 + $0xa8] sm:%s289]
                %313 = vst [vmem:[%s297 + $0x38] sm:%s289] %v312
                %v314 = vld [vmem:[%s296 + $0xc0] sm:%s289]
                %315 = vst [vmem:[%s297 + $0x40] sm:%s289] %v314
                %v316 = vld [vmem:[%s296 + $0xd8] sm:%s289]
                %317 = vst [vmem:[%s297 + $0x48] sm:%s289] %v316
                %v318 = vld [vmem:[%s296 + $0xf0] sm:%s289]
                %319 = vst [vmem:[%s297 + $0x50] sm:%s289] %v318
                %v320 = vld [vmem:[%s296 + $0x108] sm:%s289]
                %321 = vst [vmem:[%s297 + $0x58] sm:%s289] %v320
                %v322 = vld [vmem:[%s296 + $0x120] sm:%s289]
                %323 = vst [vmem:[%s297 + $0x60] sm:%s289] %v322
                %v324 = vld [vmem:[%s296 + $0x138] sm:%s289]
                %325 = vst [vmem:[%s297 + $0x68] sm:%s289] %v324
                %v326 = vld [vmem:[%s296 + $0x150] sm:%s289]
                %327 = vst [vmem:[%s297 + $0x70] sm:%s289] %v326
                %v328 = vld [vmem:[%s296 + $0x168] sm:%s289]
                %329 = vst [vmem:[%s297 + $0x78] sm:%s289] %v328
                %v330 = vld [vmem:[%s296 + $0x180] sm:%s289]
                %331 = vst [vmem:[%s297 + $0x80] sm:%s289] %v330
                %v332 = vld [vmem:[%s296 + $0x198] sm:%s289]
                %333 = vst [vmem:[%s297 + $0x88] sm:%s289] %v332
              $region53: #{clip_box_classification_forward.1} parent=47 // loop_footer
                %s295 = sadd.s32 1, %s291
              $region54: #{clip_box_classification_forward.1} parent=47 // loop_footer_branch
                %290 = sbr.rel target = $region50
              $region55: #{clip_box_classification_forward.1} parent=47 // loop_exit
                _
            $region48: #{clip_box_classification_forward.1} parent=39 // pred_fallthru
              _
          $region40: #{clip_box_classification_forward.1} parent=35 // pred_fallthru
            _
          %382 = vnop
        $region36: #{clip_box_classification_forward.1} parent=31 // pred_fallthru
          _
        // Predicated region
        $region71: #{clip_box_classification_forward.1} parent=31 // pred_check
          %p383 = pneg %p74
        $region72: #{clip_box_classification_forward.1} parent=31 // pred_check_branch
          %385 = sbr.rel (%p383) target = $region74
        $region73: #{clip_box_classification_forward.1} parent=31 // pred_region
          %s386 = smul.u32 32, %s22
          %p387 = scmp.lt.s32.totalorder %s386, 95
          %s388 = scalar_select %p387, %s386, 95
          %s389 = smul.addr %s388, 4
          %s390 = scalar_lea.vmem %s1, %s389
          %s391 = smul.u32 32, %s22
        $region74: #{clip_box_classification_forward.1} parent=31 // pred_fallthru
          _
      $region32: #{clip_box_classification_forward.1} parent=5 // pred_fallthru
        _
      %p392 = scmp.le.s32.totalorder 1, %s14
      %p393 = scmp.lt.s32.totalorder %s14, 4
      %p394 = pnand %p392, %p393
      %p395 = pneg %p394
      // Predicated region
      $region75: #{clip_box_classification_forward.1} parent=5 // pred_check
        _
      $region76: #{clip_box_classification_forward.1} parent=5 // pred_check_branch
        %397 = sbr.rel (%p394) target = $region78
      $region77: #{clip_box_classification_forward.1} parent=5 // pred_region
        %s398 = ssub.s32 %s14, 1
        %s399 = sand.u32 %s41, 1
        %s400 = sand.u32 %s41, 1
        %s401 = smul.addr %s400, 144
        %s402 = scalar_lea.vmem [#allocation3], %s401
        // Predicated region
        $region79: #{clip_box_classification_forward.1} parent=77 // pred_check
          %p403 = pneg %p54
        $region80: #{clip_box_classification_forward.1} parent=77 // pred_check_branch
          %405 = sbr.rel (%p403) target = $region82
        $region81: #{clip_box_classification_forward.1} parent=77 // pred_region
          _
        $region82: #{clip_box_classification_forward.1} parent=77 // pred_fallthru
          _
        %s406 = sand.u32 %s41, 1
        %s407 = sand.u32 %s41, 1
        %s408 = smul.addr %s407, 144
        %s409 = scalar_lea.vmem [#allocation3], %s408
        %p410 = pneg %p54
        %p411 = pneg %p51
        %s412 = smul.u32 32, %s24
        %p413 = scmp.lt.s32.totalorder %s412, 95
        %s414 = scalar_select %p413, %s412, 95
        %s415 = smul.addr %s414, 4
        %s416 = scalar_lea.vmem %s1, %s415
        %p417 = pneg %p80
        %p418 = pneg %p77
        %p419 = pneg %p101
        %p420 = pneg %p98
        %s421 = smul.u32 18, %s23
        %p422 = scmp.lt.s32.totalorder %s421, 17
        %s423 = scalar_select %p422, %s421, 17
        %s424 = smul.addr %s423, 8
        %s425 = scalar_lea.vmem %s3, %s424
        %p426 = pneg %p127
        %p427 = pneg %p124
        %s428 = smul.u32 3, %s23
        %p429 = scmp.lt.s32.totalorder %s428, 2
        %s430 = scalar_select %p429, %s428, 2
        %s431 = smul.addr %s430, 8
        %s432 = scalar_lea.vmem %s4, %s431
        %p433 = pneg %p153
        %p434 = pneg %p150
        %p435 = pneg %p174
        %p436 = pneg %p171
        %p437 = pneg %p200
        %p438 = pneg %p197
        %s439 = smul.u32 3, %s23
        %p440 = scmp.lt.s32.totalorder %s439, 2
        %s441 = scalar_select %p440, %s439, 2
        %s442 = smul.addr %s441, 8
        %s443 = scalar_lea.vmem %s6, %s442
        %p444 = pneg %p226
        %p445 = pneg %p223
        %s446 = smul.u32 3, %s23
        %p447 = scmp.lt.s32.totalorder %s446, 2
        %s448 = scalar_select %p447, %s446, 2
        %s449 = smul.addr %s448, 8
        %s450 = scalar_lea.vmem %s7, %s449
        %s451 = smul.u32 18, %s23
        %s452 = smul.u32 2, %s24
        %s453 = smul.u32 32, %s24
        %p454 = scmp.lt.s32.totalorder %s453, 95
        %s455 = scalar_select %p454, %s453, 95
        %s456 = smul.addr %s455, 4
        %s457 = scalar_lea.vmem %s1, %s456
        %s458 = smul.u32 32, %s24
        %s459 = smul.u32 18, %s23
        %p460 = scmp.lt.s32.totalorder %s459, 17
        %s461 = scalar_select %p460, %s459, 17
        %s462 = smul.addr %s461, 8
        %s463 = scalar_lea.vmem %s3, %s462
        %s464 = smul.u32 18, %s23
        %s465 = smul.u32 3, %s23
        %p466 = scmp.lt.s32.totalorder %s465, 2
        %s467 = scalar_select %p466, %s465, 2
        %s468 = smul.addr %s467, 8
        %s469 = scalar_lea.vmem %s4, %s468
        %s470 = smul.u32 3, %s23
        %s471 = smul.u32 3, %s23
        %p472 = scmp.lt.s32.totalorder %s471, 2
        %s473 = scalar_select %p472, %s471, 2
        %s474 = smul.addr %s473, 8
        %s475 = scalar_lea.vmem %s6, %s474
        %s476 = smul.u32 3, %s23
        %s477 = smul.u32 3, %s23
        %p478 = scmp.lt.s32.totalorder %s477, 2
        %s479 = scalar_select %p478, %s477, 2
        %s480 = smul.addr %s479, 8
        %s481 = scalar_lea.vmem %s7, %s480
        %s482 = smul.u32 3, %s23
        %p483 = scmp.eq.s32.totalorder %s24, 0
        // Predicated region
        $region83: #{clip_box_classification_forward.1} parent=77 // pred_check
          %p484 = pneg %p483
        $region84: #{clip_box_classification_forward.1} parent=77 // pred_check_branch
          %486 = sbr.rel (%p484) target = $region86
        $region85: #{clip_box_classification_forward.1} parent=77 // pred_region
          %487 = vst [vmem:[#allocation2] sm:$0xff] 0.0
          %488 = vst [vmem:[#allocation2 + $0x8] sm:$0xff] 0.0
          %489 = vst [vmem:[#allocation2 + $0x10] sm:$0xff] 0.0
          %490 = vst [vmem:[#allocation2 + $0x18] sm:$0xff] 0.0
          %491 = vst [vmem:[#allocation2 + $0x20] sm:$0xff] 0.0
          %492 = vst [vmem:[#allocation2 + $0x28] sm:$0xff] 0.0
          %493 = vst [vmem:[#allocation2 + $0x30] sm:$0xff] 0.0
          %494 = vst [vmem:[#allocation2 + $0x38] sm:$0xff] 0.0
          %495 = vst [vmem:[#allocation2 + $0x40] sm:$0xff] 0.0
          %496 = vst [vmem:[#allocation2 + $0x48] sm:$0xff] 0.0
          %497 = vst [vmem:[#allocation2 + $0x50] sm:$0xff] 0.0
          %498 = vst [vmem:[#allocation2 + $0x58] sm:$0xff] 0.0
          %499 = vst [vmem:[#allocation2 + $0x60] sm:$0xff] 0.0
          %500 = vst [vmem:[#allocation2 + $0x68] sm:$0xff] 0.0
          %501 = vst [vmem:[#allocation2 + $0x70] sm:$0xff] 0.0
          %502 = vst [vmem:[#allocation2 + $0x78] sm:$0xff] 0.0
          %503 = vst [vmem:[#allocation2 + $0x80] sm:$0xff] 0.0
          %504 = vst [vmem:[#allocation2 + $0x88] sm:$0xff] 0.0
        $region86: #{clip_box_classification_forward.1} parent=77 // pred_fallthru
          _
        %v505 = vld [vmem:[#allocation2] sm:$0xff]
        %v506 = vld [vmem:[#allocation2 + $0x8] sm:$0xff]
        %v507 = vld [vmem:[#allocation2 + $0x10] sm:$0xff]
        %v508 = vld [vmem:[#allocation2 + $0x18] sm:$0xff]
        %v509 = vld [vmem:[#allocation2 + $0x20] sm:$0xff]
        %v510 = vld [vmem:[#allocation2 + $0x28] sm:$0xff]
        %v511 = vld [vmem:[#allocation2 + $0x30] sm:$0xff]
        %v512 = vld [vmem:[#allocation2 + $0x38] sm:$0xff]
        %v513 = vld [vmem:[#allocation2 + $0x40] sm:$0xff]
        %v514 = vld [vmem:[#allocation2 + $0x48] sm:$0xff]
        %v515 = vld [vmem:[#allocation2 + $0x50] sm:$0xff]
        %v516 = vld [vmem:[#allocation2 + $0x58] sm:$0xff]
        %v517 = vld [vmem:[#allocation2 + $0x60] sm:$0xff]
        %v518 = vld [vmem:[#allocation2 + $0x68] sm:$0xff]
        %v519 = vld [vmem:[#allocation2 + $0x70] sm:$0xff]
        %v520 = vld [vmem:[#allocation2 + $0x78] sm:$0xff]
        %v521 = vld [vmem:[#allocation2 + $0x80] sm:$0xff]
        %v522 = vld [vmem:[#allocation2 + $0x88] sm:$0xff]
        %v523 = vld [vmem:[%s402] sm:$0xff]
        %v524 = vld [vmem:[%s402 + $0x8] sm:$0xff]
        %v525 = vld [vmem:[%s402 + $0x10] sm:$0xff]
        %v526 = vld [vmem:[%s402 + $0x18] sm:$0xff]
        %v527 = vld [vmem:[%s402 + $0x20] sm:$0xff]
        %v528 = vld [vmem:[%s402 + $0x28] sm:$0xff]
        %v529 = vld [vmem:[%s402 + $0x30] sm:$0xff]
        %v530 = vld [vmem:[%s402 + $0x38] sm:$0xff]
        %v531 = vld [vmem:[%s402 + $0x40] sm:$0xff]
        %v532 = vld [vmem:[%s402 + $0x48] sm:$0xff]
        %v533 = vld [vmem:[%s402 + $0x50] sm:$0xff]
        %v534 = vld [vmem:[%s402 + $0x58] sm:$0xff]
        %v535 = vld [vmem:[%s402 + $0x60] sm:$0xff]
        %v536 = vld [vmem:[%s402 + $0x68] sm:$0xff]
        %v537 = vld [vmem:[%s402 + $0x70] sm:$0xff]
        %v538 = vld [vmem:[%s402 + $0x78] sm:$0xff]
        %v539 = vld [vmem:[%s402 + $0x80] sm:$0xff]
        %v540 = vld [vmem:[%s402 + $0x88] sm:$0xff]
        %v541 = vld [vmem:[%s457] sm:$0xf]
        %v542 = vld [vmem:[%s457 + $0x4] sm:$0xf]
        %v543 = vld [vmem:[%s457 + $0x8] sm:$0xf]
        %v544 = vld [vmem:[%s457 + $0xc] sm:$0xf]
        %v545 = vld [vmem:[%s457 + $0x10] sm:$0xf]
        %v546 = vld [vmem:[%s457 + $0x14] sm:$0xf]
        %v547 = vld [vmem:[%s457 + $0x18] sm:$0xf]
        %v548 = vld [vmem:[%s457 + $0x1c] sm:$0xf]
        %v549 = vld [vmem:[%s457 + $0x20] sm:$0xf]
        %v550 = vld [vmem:[%s457 + $0x24] sm:$0xf]
        %v551 = vld [vmem:[%s457 + $0x28] sm:$0xf]
        %v552 = vld [vmem:[%s457 + $0x2c] sm:$0xf]
        %v553 = vld [vmem:[%s457 + $0x30] sm:$0xf]
        %v554 = vld [vmem:[%s457 + $0x34] sm:$0xf]
        %v555 = vld [vmem:[%s457 + $0x38] sm:$0xf]
        %v556 = vld [vmem:[%s457 + $0x3c] sm:$0xf]
        %v557 = vld [vmem:[%s457 + $0x40] sm:$0xf]
        %v558 = vld [vmem:[%s457 + $0x44] sm:$0xf]
        %v559 = vld [vmem:[%s457 + $0x48] sm:$0xf]
        %v560 = vld [vmem:[%s457 + $0x4c] sm:$0xf]
        %v561 = vld [vmem:[%s457 + $0x50] sm:$0xf]
        %v562 = vld [vmem:[%s457 + $0x54] sm:$0xf]
        %v563 = vld [vmem:[%s457 + $0x58] sm:$0xf]
        %v564 = vld [vmem:[%s457 + $0x5c] sm:$0xf]
        %v565 = vld [vmem:[%s457 + $0x60] sm:$0xf]
        %v566 = vld [vmem:[%s457 + $0x64] sm:$0xf]
        %v567 = vld [vmem:[%s457 + $0x68] sm:$0xf]
        %v568 = vld [vmem:[%s457 + $0x6c] sm:$0xf]
        %v569 = vld [vmem:[%s457 + $0x70] sm:$0xf]
        %v570 = vld [vmem:[%s457 + $0x74] sm:$0xf]
        %v571 = vld [vmem:[%s457 + $0x78] sm:$0xf]
        %v572 = vld [vmem:[%s457 + $0x7c] sm:$0xf]
        %v591 = vunpack.c.l.b16 %v523
        %v592 = vunpack.c.h.b16 %v523
        %v593 = vunpack.c.l.b16 %v524
        %v594 = vunpack.c.h.b16 %v524
        %v595 = vunpack.c.l.b16 %v525
        %v596 = vunpack.c.h.b16 %v525
        %v597 = vunpack.c.l.b16 %v526
        %v598 = vunpack.c.h.b16 %v526
        %v599 = vunpack.c.l.b16 %v527
        %v600 = vunpack.c.h.b16 %v527
        %v601 = vunpack.c.l.b16 %v528
        %v602 = vunpack.c.h.b16 %v528
        %v603 = vunpack.c.l.b16 %v529
        %v604 = vunpack.c.h.b16 %v529
        %v605 = vunpack.c.l.b16 %v530
        %v606 = vunpack.c.h.b16 %v530
        %v607 = vunpack.c.l.b16 %v531
        %v608 = vunpack.c.h.b16 %v531
        %v609 = vunpack.c.l.b16 %v532
        %v610 = vunpack.c.h.b16 %v532
        %v611 = vunpack.c.l.b16 %v533
        %v612 = vunpack.c.h.b16 %v533
        %v613 = vunpack.c.l.b16 %v534
        %v614 = vunpack.c.h.b16 %v534
        %v615 = vunpack.c.l.b16 %v535
        %v616 = vunpack.c.h.b16 %v535
        %v617 = vunpack.c.l.b16 %v536
        %v618 = vunpack.c.h.b16 %v536
        %v619 = vunpack.c.l.b16 %v537
        %v620 = vunpack.c.h.b16 %v537
        %v621 = vunpack.c.l.b16 %v538
        %v622 = vunpack.c.h.b16 %v538
        %v623 = vunpack.c.l.b16 %v539
        %v624 = vunpack.c.h.b16 %v539
        %v625 = vunpack.c.l.b16 %v540
        %v626 = vunpack.c.h.b16 %v540
        %v627 = vpack.c.b16 %v593, %v591
        %v628 = vpack.c.b16 %v594, %v592
        %v629 = vpack.c.b16 %v597, %v595
        %v630 = vpack.c.b16 %v598, %v596
        %v631 = vpack.c.b16 %v601, %v599
        %v632 = vpack.c.b16 %v602, %v600
        %v633 = vpack.c.b16 %v605, %v603
        %v634 = vpack.c.b16 %v606, %v604
        %v635 = vpack.c.b16 %v609, %v607
        %v636 = vpack.c.b16 %v610, %v608
        %v637 = vpack.c.b16 %v613, %v611
        %v638 = vpack.c.b16 %v614, %v612
        %v639 = vpack.c.b16 %v617, %v615
        %v640 = vpack.c.b16 %v618, %v616
        %v641 = vpack.c.b16 %v621, %v619
        %v642 = vpack.c.b16 %v622, %v620
        %v643 = vpack.c.b16 %v625, %v623
        %v644 = vpack.c.b16 %v626, %v624
        %v695 = vunpack.c.l.b16 %v541
        %v696 = vunpack.c.l.b16 %v542
        %v697 = vunpack.c.l.b16 %v543
        %v698 = vunpack.c.l.b16 %v544
        %v699 = vunpack.c.l.b16 %v545
        %v700 = vunpack.c.l.b16 %v546
        %v701 = vunpack.c.l.b16 %v547
        %v702 = vunpack.c.l.b16 %v548
        %v703 = vunpack.c.l.b16 %v549
        %v704 = vunpack.c.l.b16 %v550
        %v705 = vunpack.c.l.b16 %v551
        %v706 = vunpack.c.l.b16 %v552
        %v707 = vunpack.c.l.b16 %v553
        %v708 = vunpack.c.l.b16 %v554
        %v709 = vunpack.c.l.b16 %v555
        %v710 = vunpack.c.l.b16 %v556
        %v711 = vunpack.c.l.b16 %v557
        %v712 = vunpack.c.l.b16 %v558
        %v713 = vunpack.c.l.b16 %v559
        %v714 = vunpack.c.l.b16 %v560
        %v715 = vunpack.c.l.b16 %v561
        %v716 = vunpack.c.l.b16 %v562
        %v717 = vunpack.c.l.b16 %v563
        %v718 = vunpack.c.l.b16 %v564
        %v719 = vunpack.c.l.b16 %v565
        %v720 = vunpack.c.l.b16 %v566
        %v721 = vunpack.c.l.b16 %v567
        %v722 = vunpack.c.l.b16 %v568
        %v723 = vunpack.c.l.b16 %v569
        %v724 = vunpack.c.l.b16 %v570
        %v725 = vunpack.c.l.b16 %v571
        %v726 = vunpack.c.l.b16 %v572
        %v727 = vpack.c.b16 %v696, %v695
        %v728 = vpack.c.b16 %v698, %v697
        %v729 = vpack.c.b16 %v700, %v699
        %v730 = vpack.c.b16 %v702, %v701
        %v731 = vpack.c.b16 %v704, %v703
        %v732 = vpack.c.b16 %v706, %v705
        %v733 = vpack.c.b16 %v708, %v707
        %v734 = vpack.c.b16 %v710, %v709
        %v735 = vpack.c.b16 %v712, %v711
        %v736 = vpack.c.b16 %v714, %v713
        %v737 = vpack.c.b16 %v716, %v715
        %v738 = vpack.c.b16 %v718, %v717
        %v739 = vpack.c.b16 %v720, %v719
        %v740 = vpack.c.b16 %v722, %v721
        %v741 = vpack.c.b16 %v724, %v723
        %v742 = vpack.c.b16 %v726, %v725
        %759 = vmatpush.bf16.msra.mxu0 %v734
        %760 = vmatpush.bf16.msra.mxu0 %v733
        %761 = vmatpush.bf16.msra.mxu0 %v732
        %762 = vmatpush.bf16.msra.mxu0 %v731
        %763 = vmatpush.bf16.msra.mxu0 %v730
        %764 = vmatpush.bf16.msra.mxu0 %v729
        %765 = vmatpush.bf16.msra.mxu0 %v728
        %766 = vmatpush.bf16.msra.mxu0 %v727
        %767 = vmatmul.bf16.gmra.mxu0 %v627
        %v768 = vpop.f32.mrf.mxu0
        %v769 = vadd.f32 0.0, %v768
        %v770 = vpop.f32.mrf.mxu0
        %v771 = vadd.f32 0.0, %v770
        %772 = vmatmul.bf16.gmra.mxu0 %v629
        %v773 = vpop.f32.mrf.mxu0
        %v774 = vadd.f32 0.0, %v773
        %v775 = vpop.f32.mrf.mxu0
        %v776 = vadd.f32 0.0, %v775
        %777 = vmatmul.bf16.gmra.mxu0 %v631
        %v778 = vpop.f32.mrf.mxu0
        %v779 = vadd.f32 0.0, %v778
        %v780 = vpop.f32.mrf.mxu0
        %v781 = vadd.f32 0.0, %v780
        %782 = vmatmul.bf16.gmra.mxu0 %v633
        %v783 = vpop.f32.mrf.mxu0
        %v784 = vadd.f32 0.0, %v783
        %v785 = vpop.f32.mrf.mxu0
        %v786 = vadd.f32 0.0, %v785
        %787 = vmatmul.bf16.gmra.mxu0 %v635
        %v788 = vpop.f32.mrf.mxu0
        %v789 = vadd.f32 0.0, %v788
        %v790 = vpop.f32.mrf.mxu0
        %v791 = vadd.f32 0.0, %v790
        %792 = vmatmul.bf16.gmra.mxu0 %v637
        %v793 = vpop.f32.mrf.mxu0
        %v794 = vadd.f32 0.0, %v793
        %v795 = vpop.f32.mrf.mxu0
        %v796 = vadd.f32 0.0, %v795
        %797 = vmatmul.bf16.gmra.mxu0 %v639
        %v798 = vpop.f32.mrf.mxu0
        %v799 = vadd.f32 0.0, %v798
        %v800 = vpop.f32.mrf.mxu0
        %v801 = vadd.f32 0.0, %v800
        %802 = vmatmul.bf16.gmra.mxu0 %v641
        %v803 = vpop.f32.mrf.mxu0
        %v804 = vadd.f32 0.0, %v803
        %v805 = vpop.f32.mrf.mxu0
        %v806 = vadd.f32 0.0, %v805
        %807 = vmatmul.bf16.gmra.mxu0 %v643
        %v808 = vpop.f32.mrf.mxu0
        %v809 = vadd.f32 0.0, %v808
        %v810 = vpop.f32.mrf.mxu0
        %v811 = vadd.f32 0.0, %v810
        %812 = vdwg.mxu0
        %813 = vmatpush.bf16.msra.mxu0 %v742
        %814 = vmatpush.bf16.msra.mxu0 %v741
        %815 = vmatpush.bf16.msra.mxu0 %v740
        %816 = vmatpush.bf16.msra.mxu0 %v739
        %817 = vmatpush.bf16.msra.mxu0 %v738
        %818 = vmatpush.bf16.msra.mxu0 %v737
        %819 = vmatpush.bf16.msra.mxu0 %v736
        %820 = vmatpush.bf16.msra.mxu0 %v735
        %821 = vmatmul.bf16.gmra.mxu0 %v628
        %v822 = vpop.f32.mrf.mxu0
        %v823 = vadd.f32 %v769, %v822
        %v824 = vpop.f32.mrf.mxu0
        %v825 = vadd.f32 %v771, %v824
        %826 = vmatmul.bf16.gmra.mxu0 %v630
        %v827 = vpop.f32.mrf.mxu0
        %v828 = vadd.f32 %v774, %v827
        %v829 = vpop.f32.mrf.mxu0
        %v830 = vadd.f32 %v776, %v829
        %831 = vmatmul.bf16.gmra.mxu0 %v632
        %v832 = vpop.f32.mrf.mxu0
        %v833 = vadd.f32 %v779, %v832
        %v834 = vpop.f32.mrf.mxu0
        %v835 = vadd.f32 %v781, %v834
        %836 = vmatmul.bf16.gmra.mxu0 %v634
        %v837 = vpop.f32.mrf.mxu0
        %v838 = vadd.f32 %v784, %v837
        %v839 = vpop.f32.mrf.mxu0
        %v840 = vadd.f32 %v786, %v839
        %841 = vmatmul.bf16.gmra.mxu0 %v636
        %v842 = vpop.f32.mrf.mxu0
        %v843 = vadd.f32 %v789, %v842
        %v844 = vpop.f32.mrf.mxu0
        %v845 = vadd.f32 %v791, %v844
        %846 = vmatmul.bf16.gmra.mxu0 %v638
        %v847 = vpop.f32.mrf.mxu0
        %v848 = vadd.f32 %v794, %v847
        %v849 = vpop.f32.mrf.mxu0
        %v850 = vadd.f32 %v796, %v849
        %851 = vmatmul.bf16.gmra.mxu0 %v640
        %v852 = vpop.f32.mrf.mxu0
        %v853 = vadd.f32 %v799, %v852
        %v854 = vpop.f32.mrf.mxu0
        %v855 = vadd.f32 %v801, %v854
        %856 = vmatmul.bf16.gmra.mxu0 %v642
        %v857 = vpop.f32.mrf.mxu0
        %v858 = vadd.f32 %v804, %v857
        %v859 = vpop.f32.mrf.mxu0
        %v860 = vadd.f32 %v806, %v859
        %861 = vmatmul.bf16.gmra.mxu0 %v644
        %v862 = vpop.f32.mrf.mxu0
        %v863 = vadd.f32 %v809, %v862
        %v864 = vpop.f32.mrf.mxu0
        %v865 = vadd.f32 %v811, %v864
        %866 = vdwg.mxu0
        %v867 = vadd.f32 %v505, %v823
        %v868 = vadd.f32 %v506, %v825
        %v869 = vadd.f32 %v507, %v828
        %v870 = vadd.f32 %v508, %v830
        %v871 = vadd.f32 %v509, %v833
        %v872 = vadd.f32 %v510, %v835
        %v873 = vadd.f32 %v511, %v838
        %v874 = vadd.f32 %v512, %v840
        %v875 = vadd.f32 %v513, %v843
        %v876 = vadd.f32 %v514, %v845
        %v877 = vadd.f32 %v515, %v848
        %v878 = vadd.f32 %v516, %v850
        %v879 = vadd.f32 %v517, %v853
        %v880 = vadd.f32 %v518, %v855
        %v881 = vadd.f32 %v519, %v858
        %v882 = vadd.f32 %v520, %v860
        %v883 = vadd.f32 %v521, %v863
        %v884 = vadd.f32 %v522, %v865
        %885 = vst [vmem:[#allocation2] sm:$0xff] %v867
        %886 = vst [vmem:[#allocation2 + $0x8] sm:$0xff] %v868
        %887 = vst [vmem:[#allocation2 + $0x10] sm:$0xff] %v869
        %888 = vst [vmem:[#allocation2 + $0x18] sm:$0xff] %v870
        %889 = vst [vmem:[#allocation2 + $0x20] sm:$0xff] %v871
        %890 = vst [vmem:[#allocation2 + $0x28] sm:$0xff] %v872
        %891 = vst [vmem:[#allocation2 + $0x30] sm:$0xff] %v873
        %892 = vst [vmem:[#allocation2 + $0x38] sm:$0xff] %v874
        %893 = vst [vmem:[#allocation2 + $0x40] sm:$0xff] %v875
        %894 = vst [vmem:[#allocation2 + $0x48] sm:$0xff] %v876
        %895 = vst [vmem:[#allocation2 + $0x50] sm:$0xff] %v877
        %896 = vst [vmem:[#allocation2 + $0x58] sm:$0xff] %v878
        %897 = vst [vmem:[#allocation2 + $0x60] sm:$0xff] %v879
        %898 = vst [vmem:[#allocation2 + $0x68] sm:$0xff] %v880
        %899 = vst [vmem:[#allocation2 + $0x70] sm:$0xff] %v881
        %900 = vst [vmem:[#allocation2 + $0x78] sm:$0xff] %v882
        %901 = vst [vmem:[#allocation2 + $0x80] sm:$0xff] %v883
        %902 = vst [vmem:[#allocation2 + $0x88] sm:$0xff] %v884
        %p903 = scmp.eq.s32.totalorder %s24, 2
        // Predicated region
        $region87: #{clip_box_classification_forward.1} parent=77 // pred_check
          %p904 = pneg %p903
        $region88: #{clip_box_classification_forward.1} parent=77 // pred_check_branch
          %906 = sbr.rel (%p904) target = $region90
        $region89: #{clip_box_classification_forward.1} parent=77 // pred_region
          %v907 = vld [vmem:[#allocation2] sm:$0xff]
          %v908 = vld [vmem:[#allocation2 + $0x8] sm:$0xff]
          %v909 = vld [vmem:[#allocation2 + $0x10] sm:$0xff]
          %v910 = vld [vmem:[#allocation2 + $0x18] sm:$0xff]
          %v911 = vld [vmem:[#allocation2 + $0x20] sm:$0xff]
          %v912 = vld [vmem:[#allocation2 + $0x28] sm:$0xff]
          %v913 = vld [vmem:[#allocation2 + $0x30] sm:$0xff]
          %v914 = vld [vmem:[#allocation2 + $0x38] sm:$0xff]
          %v915 = vld [vmem:[#allocation2 + $0x40] sm:$0xff]
          %v916 = vld [vmem:[#allocation2 + $0x48] sm:$0xff]
          %v917 = vld [vmem:[#allocation2 + $0x50] sm:$0xff]
          %v918 = vld [vmem:[#allocation2 + $0x58] sm:$0xff]
          %v919 = vld [vmem:[#allocation2 + $0x60] sm:$0xff]
          %v920 = vld [vmem:[#allocation2 + $0x68] sm:$0xff]
          %v921 = vld [vmem:[#allocation2 + $0x70] sm:$0xff]
          %v922 = vld [vmem:[#allocation2 + $0x78] sm:$0xff]
          %v923 = vld [vmem:[#allocation2 + $0x80] sm:$0xff]
          %v924 = vld [vmem:[#allocation2 + $0x88] sm:$0xff]
          %v925 = vmul.f32 %v907, %v907
          %v926 = vmul.f32 %v908, %v908
          %v927 = vmul.f32 %v909, %v909
          %v928 = vmul.f32 %v910, %v910
          %v929 = vmul.f32 %v911, %v911
          %v930 = vmul.f32 %v912, %v912
          %v931 = vmul.f32 %v913, %v913
          %v932 = vmul.f32 %v914, %v914
          %v933 = vmul.f32 %v915, %v915
          %v934 = vmul.f32 %v916, %v916
          %v935 = vmul.f32 %v917, %v917
          %v936 = vmul.f32 %v918, %v918
          %v937 = vmul.f32 %v919, %v919
          %v938 = vmul.f32 %v920, %v920
          %v939 = vmul.f32 %v921, %v921
          %v940 = vmul.f32 %v922, %v922
          %v941 = vmul.f32 %v923, %v923
          %v942 = vmul.f32 %v924, %v924
          %943 = vadd.xlane.f32.xlu0 %v925
          %v944 = vpop.xlane.xlu0 %943
          %945 = vadd.xlane.f32.xlu0 %v926
          %v946 = vpop.xlane.xlu0 %945
          %947 = vadd.xlane.f32.xlu0 %v927
          %v948 = vpop.xlane.xlu0 %947
          %949 = vadd.xlane.f32.xlu0 %v928
          %v950 = vpop.xlane.xlu0 %949
          %951 = vadd.xlane.f32.xlu0 %v929
          %v952 = vpop.xlane.xlu0 %951
          %953 = vadd.xlane.f32.xlu0 %v930
          %v954 = vpop.xlane.xlu0 %953
          %955 = vadd.xlane.f32.xlu0 %v931
          %v956 = vpop.xlane.xlu0 %955
          %957 = vadd.xlane.f32.xlu0 %v932
          %v958 = vpop.xlane.xlu0 %957
          %959 = vadd.xlane.f32.xlu0 %v933
          %v960 = vpop.xlane.xlu0 %959
          %961 = vadd.xlane.f32.xlu0 %v934
          %v962 = vpop.xlane.xlu0 %961
          %963 = vadd.xlane.f32.xlu0 %v935
          %v964 = vpop.xlane.xlu0 %963
          %965 = vadd.xlane.f32.xlu0 %v936
          %v966 = vpop.xlane.xlu0 %965
          %967 = vadd.xlane.f32.xlu0 %v937
          %v968 = vpop.xlane.xlu0 %967
          %969 = vadd.xlane.f32.xlu0 %v938
          %v970 = vpop.xlane.xlu0 %969
          %971 = vadd.xlane.f32.xlu0 %v939
          %v972 = vpop.xlane.xlu0 %971
          %973 = vadd.xlane.f32.xlu0 %v940
          %v974 = vpop.xlane.xlu0 %973
          %975 = vadd.xlane.f32.xlu0 %v941
          %v976 = vpop.xlane.xlu0 %975
          %977 = vadd.xlane.f32.xlu0 %v942
          %v978 = vpop.xlane.xlu0 %977
          %v979 = vadd.f32 %v944, 1e-12
          %v980 = vadd.f32 %v946, 1e-12
          %v981 = vadd.f32 %v948, 1e-12
          %v982 = vadd.f32 %v950, 1e-12
          %v983 = vadd.f32 %v952, 1e-12
          %v984 = vadd.f32 %v954, 1e-12
          %v985 = vadd.f32 %v956, 1e-12
          %v986 = vadd.f32 %v958, 1e-12
          %v987 = vadd.f32 %v960, 1e-12
          %v988 = vadd.f32 %v962, 1e-12
          %v989 = vadd.f32 %v964, 1e-12
          %v990 = vadd.f32 %v966, 1e-12
          %v991 = vadd.f32 %v968, 1e-12
          %v992 = vadd.f32 %v970, 1e-12
          %v993 = vadd.f32 %v972, 1e-12
          %v994 = vadd.f32 %v974, 1e-12
          %v995 = vadd.f32 %v976, 1e-12
          %v996 = vadd.f32 %v978, 1e-12
          %v997 = vrsqrt.pop %v979
          %v998 = vmul.f32 %v997, %v979
          %v999 = vmul.f32 %v998, %v997
          %v1000 = vmul.f32 0.5, %v999
          %v1001 = vsub.f32 1.5, %v1000
          %v1002 = vmul.f32 %v997, %v1001
          %vm1003 = vweird.f32 %v979
          %vm1004 = vweird.f32 %v997
          %vm1005 = vmor %vm1003, %vm1004
          %v1006 = vsel %vm1005, %v997, %v1002
          %v1007 = vrsqrt.pop %v980
          %v1008 = vmul.f32 %v1007, %v980
          %v1009 = vmul.f32 %v1008, %v1007
          %v1010 = vmul.f32 0.5, %v1009
          %v1011 = vsub.f32 1.5, %v1010
          %v1012 = vmul.f32 %v1007, %v1011
          %vm1013 = vweird.f32 %v980
          %vm1014 = vweird.f32 %v1007
          %vm1015 = vmor %vm1013, %vm1014
          %v1016 = vsel %vm1015, %v1007, %v1012
          %v1017 = vrsqrt.pop %v981
          %v1018 = vmul.f32 %v1017, %v981
          %v1019 = vmul.f32 %v1018, %v1017
          %v1020 = vmul.f32 0.5, %v1019
          %v1021 = vsub.f32 1.5, %v1020
          %v1022 = vmul.f32 %v1017, %v1021
          %vm1023 = vweird.f32 %v981
          %vm1024 = vweird.f32 %v1017
          %vm1025 = vmor %vm1023, %vm1024
          %v1026 = vsel %vm1025, %v1017, %v1022
          %v1027 = vrsqrt.pop %v982
          %v1028 = vmul.f32 %v1027, %v982
          %v1029 = vmul.f32 %v1028, %v1027
          %v1030 = vmul.f32 0.5, %v1029
          %v1031 = vsub.f32 1.5, %v1030
          %v1032 = vmul.f32 %v1027, %v1031
          %vm1033 = vweird.f32 %v982
          %vm1034 = vweird.f32 %v1027
          %vm1035 = vmor %vm1033, %vm1034
          %v1036 = vsel %vm1035, %v1027, %v1032
          %v1037 = vrsqrt.pop %v983
          %v1038 = vmul.f32 %v1037, %v983
          %v1039 = vmul.f32 %v1038, %v1037
          %v1040 = vmul.f32 0.5, %v1039
          %v1041 = vsub.f32 1.5, %v1040
          %v1042 = vmul.f32 %v1037, %v1041
          %vm1043 = vweird.f32 %v983
          %vm1044 = vweird.f32 %v1037
          %vm1045 = vmor %vm1043, %vm1044
          %v1046 = vsel %vm1045, %v1037, %v1042
          %v1047 = vrsqrt.pop %v984
          %v1048 = vmul.f32 %v1047, %v984
          %v1049 = vmul.f32 %v1048, %v1047
          %v1050 = vmul.f32 0.5, %v1049
          %v1051 = vsub.f32 1.5, %v1050
          %v1052 = vmul.f32 %v1047, %v1051
          %vm1053 = vweird.f32 %v984
          %vm1054 = vweird.f32 %v1047
          %vm1055 = vmor %vm1053, %vm1054
          %v1056 = vsel %vm1055, %v1047, %v1052
          %v1057 = vrsqrt.pop %v985
          %v1058 = vmul.f32 %v1057, %v985
          %v1059 = vmul.f32 %v1058, %v1057
          %v1060 = vmul.f32 0.5, %v1059
          %v1061 = vsub.f32 1.5, %v1060
          %v1062 = vmul.f32 %v1057, %v1061
          %vm1063 = vweird.f32 %v985
          %vm1064 = vweird.f32 %v1057
          %vm1065 = vmor %vm1063, %vm1064
          %v1066 = vsel %vm1065, %v1057, %v1062
          %v1067 = vrsqrt.pop %v986
          %v1068 = vmul.f32 %v1067, %v986
          %v1069 = vmul.f32 %v1068, %v1067
          %v1070 = vmul.f32 0.5, %v1069
          %v1071 = vsub.f32 1.5, %v1070
          %v1072 = vmul.f32 %v1067, %v1071
          %vm1073 = vweird.f32 %v986
          %vm1074 = vweird.f32 %v1067
          %vm1075 = vmor %vm1073, %vm1074
          %v1076 = vsel %vm1075, %v1067, %v1072
          %v1077 = vrsqrt.pop %v987
          %v1078 = vmul.f32 %v1077, %v987
          %v1079 = vmul.f32 %v1078, %v1077
          %v1080 = vmul.f32 0.5, %v1079
          %v1081 = vsub.f32 1.5, %v1080
          %v1082 = vmul.f32 %v1077, %v1081
          %vm1083 = vweird.f32 %v987
          %vm1084 = vweird.f32 %v1077
          %vm1085 = vmor %vm1083, %vm1084
          %v1086 = vsel %vm1085, %v1077, %v1082
          %v1087 = vrsqrt.pop %v988
          %v1088 = vmul.f32 %v1087, %v988
          %v1089 = vmul.f32 %v1088, %v1087
          %v1090 = vmul.f32 0.5, %v1089
          %v1091 = vsub.f32 1.5, %v1090
          %v1092 = vmul.f32 %v1087, %v1091
          %vm1093 = vweird.f32 %v988
          %vm1094 = vweird.f32 %v1087
          %vm1095 = vmor %vm1093, %vm1094
          %v1096 = vsel %vm1095, %v1087, %v1092
          %v1097 = vrsqrt.pop %v989
          %v1098 = vmul.f32 %v1097, %v989
          %v1099 = vmul.f32 %v1098, %v1097
          %v1100 = vmul.f32 0.5, %v1099
          %v1101 = vsub.f32 1.5, %v1100
          %v1102 = vmul.f32 %v1097, %v1101
          %vm1103 = vweird.f32 %v989
          %vm1104 = vweird.f32 %v1097
          %vm1105 = vmor %vm1103, %vm1104
          %v1106 = vsel %vm1105, %v1097, %v1102
          %v1107 = vrsqrt.pop %v990
          %v1108 = vmul.f32 %v1107, %v990
          %v1109 = vmul.f32 %v1108, %v1107
          %v1110 = vmul.f32 0.5, %v1109
          %v1111 = vsub.f32 1.5, %v1110
          %v1112 = vmul.f32 %v1107, %v1111
          %vm1113 = vweird.f32 %v990
          %vm1114 = vweird.f32 %v1107
          %vm1115 = vmor %vm1113, %vm1114
          %v1116 = vsel %vm1115, %v1107, %v1112
          %v1117 = vrsqrt.pop %v991
          %v1118 = vmul.f32 %v1117, %v991
          %v1119 = vmul.f32 %v1118, %v1117
          %v1120 = vmul.f32 0.5, %v1119
          %v1121 = vsub.f32 1.5, %v1120
          %v1122 = vmul.f32 %v1117, %v1121
          %vm1123 = vweird.f32 %v991
          %vm1124 = vweird.f32 %v1117
          %vm1125 = vmor %vm1123, %vm1124
          %v1126 = vsel %vm1125, %v1117, %v1122
          %v1127 = vrsqrt.pop %v992
          %v1128 = vmul.f32 %v1127, %v992
          %v1129 = vmul.f32 %v1128, %v1127
          %v1130 = vmul.f32 0.5, %v1129
          %v1131 = vsub.f32 1.5, %v1130
          %v1132 = vmul.f32 %v1127, %v1131
          %vm1133 = vweird.f32 %v992
          %vm1134 = vweird.f32 %v1127
          %vm1135 = vmor %vm1133, %vm1134
          %v1136 = vsel %vm1135, %v1127, %v1132
          %v1137 = vrsqrt.pop %v993
          %v1138 = vmul.f32 %v1137, %v993
          %v1139 = vmul.f32 %v1138, %v1137
          %v1140 = vmul.f32 0.5, %v1139
          %v1141 = vsub.f32 1.5, %v1140
          %v1142 = vmul.f32 %v1137, %v1141
          %vm1143 = vweird.f32 %v993
          %vm1144 = vweird.f32 %v1137
          %vm1145 = vmor %vm1143, %vm1144
          %v1146 = vsel %vm1145, %v1137, %v1142
          %v1147 = vrsqrt.pop %v994
          %v1148 = vmul.f32 %v1147, %v994
          %v1149 = vmul.f32 %v1148, %v1147
          %v1150 = vmul.f32 0.5, %v1149
          %v1151 = vsub.f32 1.5, %v1150
          %v1152 = vmul.f32 %v1147, %v1151
          %vm1153 = vweird.f32 %v994
          %vm1154 = vweird.f32 %v1147
          %vm1155 = vmor %vm1153, %vm1154
          %v1156 = vsel %vm1155, %v1147, %v1152
          %v1157 = vrsqrt.pop %v995
          %v1158 = vmul.f32 %v1157, %v995
          %v1159 = vmul.f32 %v1158, %v1157
          %v1160 = vmul.f32 0.5, %v1159
          %v1161 = vsub.f32 1.5, %v1160
          %v1162 = vmul.f32 %v1157, %v1161
          %vm1163 = vweird.f32 %v995
          %vm1164 = vweird.f32 %v1157
          %vm1165 = vmor %vm1163, %vm1164
          %v1166 = vsel %vm1165, %v1157, %v1162
          %v1167 = vrsqrt.pop %v996
          %v1168 = vmul.f32 %v1167, %v996
          %v1169 = vmul.f32 %v1168, %v1167
          %v1170 = vmul.f32 0.5, %v1169
          %v1171 = vsub.f32 1.5, %v1170
          %v1172 = vmul.f32 %v1167, %v1171
          %vm1173 = vweird.f32 %v996
          %vm1174 = vweird.f32 %v1167
          %vm1175 = vmor %vm1173, %vm1174
          %v1176 = vsel %vm1175, %v1167, %v1172
          %v1177 = vmul.f32 %v907, %v1006
          %v1178 = vmul.f32 %v908, %v1016
          %v1179 = vmul.f32 %v909, %v1026
          %v1180 = vmul.f32 %v910, %v1036
          %v1181 = vmul.f32 %v911, %v1046
          %v1182 = vmul.f32 %v912, %v1056
          %v1183 = vmul.f32 %v913, %v1066
          %v1184 = vmul.f32 %v914, %v1076
          %v1185 = vmul.f32 %v915, %v1086
          %v1186 = vmul.f32 %v916, %v1096
          %v1187 = vmul.f32 %v917, %v1106
          %v1188 = vmul.f32 %v918, %v1116
          %v1189 = vmul.f32 %v919, %v1126
          %v1190 = vmul.f32 %v920, %v1136
          %v1191 = vmul.f32 %v921, %v1146
          %v1192 = vmul.f32 %v922, %v1156
          %v1193 = vmul.f32 %v923, %v1166
          %v1194 = vmul.f32 %v924, %v1176
          %v1195 = vld [vmem:[%s2] sm:$0xff]
          %v1196 = vld [vmem:[%s2 + $0x8] sm:$0xff]
          %v1197 = vld [vmem:[%s2 + $0x10] sm:$0xff]
          %v1198 = vld [vmem:[%s2 + $0x18] sm:$0xff]
          %v1199 = vld [vmem:[%s2 + $0x20] sm:$0xff]
          %v1200 = vld [vmem:[%s2 + $0x28] sm:$0xff]
          %v1201 = vld [vmem:[%s2 + $0x30] sm:$0xff]
          %v1202 = vld [vmem:[%s2 + $0x38] sm:$0xff]
          %v1203 = vld [vmem:[%s2 + $0x40] sm:$0xff]
          %v1204 = vld [vmem:[%s2 + $0x48] sm:$0xff]
          %v1205 = vld [vmem:[%s2 + $0x50] sm:$0xff]
          %v1206 = vld [vmem:[%s2 + $0x58] sm:$0xff]
          %v1207 = vld [vmem:[%s2 + $0x60] sm:$0xff]
          %v1208 = vld [vmem:[%s2 + $0x68] sm:$0xff]
          %v1209 = vld [vmem:[%s2 + $0x70] sm:$0xff]
          %v1210 = vld [vmem:[%s2 + $0x78] sm:$0xff]
          %1211 = vmatpush.msra.mxu0 %v1210
          %1212 = vmatpush.msra.mxu0 %v1209
          %1213 = vmatpush.msra.mxu0 %v1208
          %1214 = vmatpush.msra.mxu0 %v1207
          %1215 = vmatpush.msra.mxu0 %v1206
          %1216 = vmatpush.msra.mxu0 %v1205
          %1217 = vmatpush.msra.mxu0 %v1204
          %1218 = vmatpush.msra.mxu0 %v1203
          %1219 = vmatpush.msra.mxu0 %v1202
          %1220 = vmatpush.msra.mxu0 %v1201
          %1221 = vmatpush.msra.mxu0 %v1200
          %1222 = vmatpush.msra.mxu0 %v1199
          %1223 = vmatpush.msra.mxu0 %v1198
          %1224 = vmatpush.msra.mxu0 %v1197
          %1225 = vmatpush.msra.mxu0 %v1196
          %1226 = vmatpush.msra.mxu0 %v1195
          %1227 = vmatmul.f32.gmra.mxu0 %v1177
          %v1228 = vpop.f32.mrf.mxu0
          %v1229 = vadd.f32 0.0, %v1228
          %1230 = vmatmul.f32.gmra.mxu0 %v1178
          %v1231 = vpop.f32.mrf.mxu0
          %v1232 = vadd.f32 0.0, %v1231
          %1233 = vmatmul.f32.gmra.mxu0 %v1179
          %v1234 = vpop.f32.mrf.mxu0
          %v1235 = vadd.f32 0.0, %v1234
          %1236 = vmatmul.f32.gmra.mxu0 %v1180
          %v1237 = vpop.f32.mrf.mxu0
          %v1238 = vadd.f32 0.0, %v1237
          %1239 = vmatmul.f32.gmra.mxu0 %v1181
          %v1240 = vpop.f32.mrf.mxu0
          %v1241 = vadd.f32 0.0, %v1240
          %1242 = vmatmul.f32.gmra.mxu0 %v1182
          %v1243 = vpop.f32.mrf.mxu0
          %v1244 = vadd.f32 0.0, %v1243
          %1245 = vmatmul.f32.gmra.mxu0 %v1183
          %v1246 = vpop.f32.mrf.mxu0
          %v1247 = vadd.f32 0.0, %v1246
          %1248 = vmatmul.f32.gmra.mxu0 %v1184
          %v1249 = vpop.f32.mrf.mxu0
          %v1250 = vadd.f32 0.0, %v1249
          %1251 = vmatmul.f32.gmra.mxu0 %v1185
          %v1252 = vpop.f32.mrf.mxu0
          %v1253 = vadd.f32 0.0, %v1252
          %1254 = vmatmul.f32.gmra.mxu0 %v1186
          %v1255 = vpop.f32.mrf.mxu0
          %v1256 = vadd.f32 0.0, %v1255
          %1257 = vmatmul.f32.gmra.mxu0 %v1187
          %v1258 = vpop.f32.mrf.mxu0
          %v1259 = vadd.f32 0.0, %v1258
          %1260 = vmatmul.f32.gmra.mxu0 %v1188
          %v1261 = vpop.f32.mrf.mxu0
          %v1262 = vadd.f32 0.0, %v1261
          %1263 = vmatmul.f32.gmra.mxu0 %v1189
          %v1264 = vpop.f32.mrf.mxu0
          %v1265 = vadd.f32 0.0, %v1264
          %1266 = vmatmul.f32.gmra.mxu0 %v1190
          %v1267 = vpop.f32.mrf.mxu0
          %v1268 = vadd.f32 0.0, %v1267
          %1269 = vmatmul.f32.gmra.mxu0 %v1191
          %v1270 = vpop.f32.mrf.mxu0
          %v1271 = vadd.f32 0.0, %v1270
          %1272 = vmatmul.f32.gmra.mxu0 %v1192
          %v1273 = vpop.f32.mrf.mxu0
          %v1274 = vadd.f32 0.0, %v1273
          %1275 = vmatmul.f32.gmra.mxu0 %v1193
          %v1276 = vpop.f32.mrf.mxu0
          %v1277 = vadd.f32 0.0, %v1276
          %1278 = vmatmul.f32.gmra.mxu0 %v1194
          %v1279 = vpop.f32.mrf.mxu0
          %v1280 = vadd.f32 0.0, %v1279
          %1281 = vdwg.mxu0
          %vm1282 = vcmask 80896
          %v1283 = vsel %vm1282, %v1229, -inf
          %1284 = vmax.xlane.f32.xlu0 %v1283
          %v1285 = vpop.xlane.xlu0 %1284
          %v1286 = vsel %vm1282, %v1232, -inf
          %1287 = vmax.xlane.f32.xlu0 %v1286
          %v1288 = vpop.xlane.xlu0 %1287
          %v1289 = vsel %vm1282, %v1235, -inf
          %1290 = vmax.xlane.f32.xlu0 %v1289
          %v1291 = vpop.xlane.xlu0 %1290
          %v1292 = vsel %vm1282, %v1238, -inf
          %1293 = vmax.xlane.f32.xlu0 %v1292
          %v1294 = vpop.xlane.xlu0 %1293
          %v1295 = vsel %vm1282, %v1241, -inf
          %1296 = vmax.xlane.f32.xlu0 %v1295
          %v1297 = vpop.xlane.xlu0 %1296
          %v1298 = vsel %vm1282, %v1244, -inf
          %1299 = vmax.xlane.f32.xlu0 %v1298
          %v1300 = vpop.xlane.xlu0 %1299
          %v1301 = vsel %vm1282, %v1247, -inf
          %1302 = vmax.xlane.f32.xlu0 %v1301
          %v1303 = vpop.xlane.xlu0 %1302
          %v1304 = vsel %vm1282, %v1250, -inf
          %1305 = vmax.xlane.f32.xlu0 %v1304
          %v1306 = vpop.xlane.xlu0 %1305
          %v1307 = vsel %vm1282, %v1253, -inf
          %1308 = vmax.xlane.f32.xlu0 %v1307
          %v1309 = vpop.xlane.xlu0 %1308
          %v1310 = vsel %vm1282, %v1256, -inf
          %1311 = vmax.xlane.f32.xlu0 %v1310
          %v1312 = vpop.xlane.xlu0 %1311
          %v1313 = vsel %vm1282, %v1259, -inf
          %1314 = vmax.xlane.f32.xlu0 %v1313
          %v1315 = vpop.xlane.xlu0 %1314
          %v1316 = vsel %vm1282, %v1262, -inf
          %1317 = vmax.xlane.f32.xlu0 %v1316
          %v1318 = vpop.xlane.xlu0 %1317
          %v1319 = vsel %vm1282, %v1265, -inf
          %1320 = vmax.xlane.f32.xlu0 %v1319
          %v1321 = vpop.xlane.xlu0 %1320
          %v1322 = vsel %vm1282, %v1268, -inf
          %1323 = vmax.xlane.f32.xlu0 %v1322
          %v1324 = vpop.xlane.xlu0 %1323
          %v1325 = vsel %vm1282, %v1271, -inf
          %1326 = vmax.xlane.f32.xlu0 %v1325
          %v1327 = vpop.xlane.xlu0 %1326
          %v1328 = vsel %vm1282, %v1274, -inf
          %1329 = vmax.xlane.f32.xlu0 %v1328
          %v1330 = vpop.xlane.xlu0 %1329
          %v1331 = vsel %vm1282, %v1277, -inf
          %1332 = vmax.xlane.f32.xlu0 %v1331
          %v1333 = vpop.xlane.xlu0 %1332
          %v1334 = vsel %vm1282, %v1280, -inf
          %1335 = vmax.xlane.f32.xlu0 %v1334
          %v1336 = vpop.xlane.xlu0 %1335
          %v1337 = vsub.f32 %v1229, %v1285
          %v1338 = vsub.f32 %v1232, %v1288
          %v1339 = vsub.f32 %v1235, %v1291
          %v1340 = vsub.f32 %v1238, %v1294
          %v1341 = vsub.f32 %v1241, %v1297
          %v1342 = vsub.f32 %v1244, %v1300
          %v1343 = vsub.f32 %v1247, %v1303
          %v1344 = vsub.f32 %v1250, %v1306
          %v1345 = vsub.f32 %v1253, %v1309
          %v1346 = vsub.f32 %v1256, %v1312
          %v1347 = vsub.f32 %v1259, %v1315
          %v1348 = vsub.f32 %v1262, %v1318
          %v1349 = vsub.f32 %v1265, %v1321
          %v1350 = vsub.f32 %v1268, %v1324
          %v1351 = vsub.f32 %v1271, %v1327
          %v1352 = vsub.f32 %v1274, %v1330
          %v1353 = vsub.f32 %v1277, %v1333
          %v1354 = vsub.f32 %v1280, %v1336
          %v1355 = vmul.f32 %v1337, 1.442695
          %v1356 = vpow.pop %v1355
          %v1357 = vmul.f32 %v1338, 1.442695
          %v1358 = vpow.pop %v1357
          %v1359 = vmul.f32 %v1339, 1.442695
          %v1360 = vpow.pop %v1359
          %v1361 = vmul.f32 %v1340, 1.442695
          %v1362 = vpow.pop %v1361
          %v1363 = vmul.f32 %v1341, 1.442695
          %v1364 = vpow.pop %v1363
          %v1365 = vmul.f32 %v1342, 1.442695
          %v1366 = vpow.pop %v1365
          %v1367 = vmul.f32 %v1343, 1.442695
          %v1368 = vpow.pop %v1367
          %v1369 = vmul.f32 %v1344, 1.442695
          %v1370 = vpow.pop %v1369
          %v1371 = vmul.f32 %v1345, 1.442695
          %v1372 = vpow.pop %v1371
          %v1373 = vmul.f32 %v1346, 1.442695
          %v1374 = vpow.pop %v1373
          %v1375 = vmul.f32 %v1347, 1.442695
          %v1376 = vpow.pop %v1375
          %v1377 = vmul.f32 %v1348, 1.442695
          %v1378 = vpow.pop %v1377
          %v1379 = vmul.f32 %v1349, 1.442695
          %v1380 = vpow.pop %v1379
          %v1381 = vmul.f32 %v1350, 1.442695
          %v1382 = vpow.pop %v1381
          %v1383 = vmul.f32 %v1351, 1.442695
          %v1384 = vpow.pop %v1383
          %v1385 = vmul.f32 %v1352, 1.442695
          %v1386 = vpow.pop %v1385
          %v1387 = vmul.f32 %v1353, 1.442695
          %v1388 = vpow.pop %v1387
          %v1389 = vmul.f32 %v1354, 1.442695
          %v1390 = vpow.pop %v1389
          %v1391 = vsel %vm1282, %v1356, 0.0
          %1392 = vadd.xlane.f32.xlu0 %v1391
          %v1393 = vpop.xlane.xlu0 %1392
          %v1394 = vsel %vm1282, %v1358, 0.0
          %1395 = vadd.xlane.f32.xlu0 %v1394
          %v1396 = vpop.xlane.xlu0 %1395
          %v1397 = vsel %vm1282, %v1360, 0.0
          %1398 = vadd.xlane.f32.xlu0 %v1397
          %v1399 = vpop.xlane.xlu0 %1398
          %v1400 = vsel %vm1282, %v1362, 0.0
          %1401 = vadd.xlane.f32.xlu0 %v1400
          %v1402 = vpop.xlane.xlu0 %1401
          %v1403 = vsel %vm1282, %v1364, 0.0
          %1404 = vadd.xlane.f32.xlu0 %v1403
          %v1405 = vpop.xlane.xlu0 %1404
          %v1406 = vsel %vm1282, %v1366, 0.0
          %1407 = vadd.xlane.f32.xlu0 %v1406
          %v1408 = vpop.xlane.xlu0 %1407
          %v1409 = vsel %vm1282, %v1368, 0.0
          %1410 = vadd.xlane.f32.xlu0 %v1409
          %v1411 = vpop.xlane.xlu0 %1410
          %v1412 = vsel %vm1282, %v1370, 0.0
          %1413 = vadd.xlane.f32.xlu0 %v1412
          %v1414 = vpop.xlane.xlu0 %1413
          %v1415 = vsel %vm1282, %v1372, 0.0
          %1416 = vadd.xlane.f32.xlu0 %v1415
          %v1417 = vpop.xlane.xlu0 %1416
          %v1418 = vsel %vm1282, %v1374, 0.0
          %1419 = vadd.xlane.f32.xlu0 %v1418
          %v1420 = vpop.xlane.xlu0 %1419
          %v1421 = vsel %vm1282, %v1376, 0.0
          %1422 = vadd.xlane.f32.xlu0 %v1421
          %v1423 = vpop.xlane.xlu0 %1422
          %v1424 = vsel %vm1282, %v1378, 0.0
          %1425 = vadd.xlane.f32.xlu0 %v1424
          %v1426 = vpop.xlane.xlu0 %1425
          %v1427 = vsel %vm1282, %v1380, 0.0
          %1428 = vadd.xlane.f32.xlu0 %v1427
          %v1429 = vpop.xlane.xlu0 %1428
          %v1430 = vsel %vm1282, %v1382, 0.0
          %1431 = vadd.xlane.f32.xlu0 %v1430
          %v1432 = vpop.xlane.xlu0 %1431
          %v1433 = vsel %vm1282, %v1384, 0.0
          %1434 = vadd.xlane.f32.xlu0 %v1433
          %v1435 = vpop.xlane.xlu0 %1434
          %v1436 = vsel %vm1282, %v1386, 0.0
          %1437 = vadd.xlane.f32.xlu0 %v1436
          %v1438 = vpop.xlane.xlu0 %1437
          %v1439 = vsel %vm1282, %v1388, 0.0
          %1440 = vadd.xlane.f32.xlu0 %v1439
          %v1441 = vpop.xlane.xlu0 %1440
          %v1442 = vsel %vm1282, %v1390, 0.0
          %1443 = vadd.xlane.f32.xlu0 %v1442
          %v1444 = vpop.xlane.xlu0 %1443
          %v1445 = vrcp.pop %v1393
          %v1446 = vmul.f32 %v1393, %v1445
          %v1447 = vsub.f32 1.0, %v1446
          %v1448 = vmul.f32 %v1445, %v1447
          %v1449 = vadd.f32 %v1445, %v1448
          %vm1450 = vweird.f32 %v1393
          %vm1451 = vweird.f32 %v1445
          %vm1452 = vmor %vm1450, %vm1451
          %v1453 = vsel %vm1452, %v1445, %v1449
          %v1454 = vand.u32 2147483647, %v1393
          %vm1455 = vcmp.eq.f32.partialorder %v1454, 8.507059e+37
          %v1456 = vand.u32 %v1393, 2147483648
          %v1457 = vor.u32 1.1754944e-38, %v1456
          %v1458 = vsel %vm1455, %v1457, %v1453
          %v1459 = vmul.f32 %v1356, %v1458
          %v1460 = vrcp.pop %v1396
          %v1461 = vmul.f32 %v1396, %v1460
          %v1462 = vsub.f32 1.0, %v1461
          %v1463 = vmul.f32 %v1460, %v1462
          %v1464 = vadd.f32 %v1460, %v1463
          %vm1465 = vweird.f32 %v1396
          %vm1466 = vweird.f32 %v1460
          %vm1467 = vmor %vm1465, %vm1466
          %v1468 = vsel %vm1467, %v1460, %v1464
          %v1469 = vand.u32 2147483647, %v1396
          %vm1470 = vcmp.eq.f32.partialorder %v1469, 8.507059e+37
          %v1471 = vand.u32 %v1396, 2147483648
          %v1472 = vor.u32 1.1754944e-38, %v1471
          %v1473 = vsel %vm1470, %v1472, %v1468
          %v1474 = vmul.f32 %v1358, %v1473
          %v1475 = vrcp.pop %v1399
          %v1476 = vmul.f32 %v1399, %v1475
          %v1477 = vsub.f32 1.0, %v1476
          %v1478 = vmul.f32 %v1475, %v1477
          %v1479 = vadd.f32 %v1475, %v1478
          %vm1480 = vweird.f32 %v1399
          %vm1481 = vweird.f32 %v1475
          %vm1482 = vmor %vm1480, %vm1481
          %v1483 = vsel %vm1482, %v1475, %v1479
          %v1484 = vand.u32 2147483647, %v1399
          %vm1485 = vcmp.eq.f32.partialorder %v1484, 8.507059e+37
          %v1486 = vand.u32 %v1399, 2147483648
          %v1487 = vor.u32 1.1754944e-38, %v1486
          %v1488 = vsel %vm1485, %v1487, %v1483
          %v1489 = vmul.f32 %v1360, %v1488
          %v1490 = vrcp.pop %v1402
          %v1491 = vmul.f32 %v1402, %v1490
          %v1492 = vsub.f32 1.0, %v1491
          %v1493 = vmul.f32 %v1490, %v1492
          %v1494 = vadd.f32 %v1490, %v1493
          %vm1495 = vweird.f32 %v1402
          %vm1496 = vweird.f32 %v1490
          %vm1497 = vmor %vm1495, %vm1496
          %v1498 = vsel %vm1497, %v1490, %v1494
          %v1499 = vand.u32 2147483647, %v1402
          %vm1500 = vcmp.eq.f32.partialorder %v1499, 8.507059e+37
          %v1501 = vand.u32 %v1402, 2147483648
          %v1502 = vor.u32 1.1754944e-38, %v1501
          %v1503 = vsel %vm1500, %v1502, %v1498
          %v1504 = vmul.f32 %v1362, %v1503
          %v1505 = vrcp.pop %v1405
          %v1506 = vmul.f32 %v1405, %v1505
          %v1507 = vsub.f32 1.0, %v1506
          %v1508 = vmul.f32 %v1505, %v1507
          %v1509 = vadd.f32 %v1505, %v1508
          %vm1510 = vweird.f32 %v1405
          %vm1511 = vweird.f32 %v1505
          %vm1512 = vmor %vm1510, %vm1511
          %v1513 = vsel %vm1512, %v1505, %v1509
          %v1514 = vand.u32 2147483647, %v1405
          %vm1515 = vcmp.eq.f32.partialorder %v1514, 8.507059e+37
          %v1516 = vand.u32 %v1405, 2147483648
          %v1517 = vor.u32 1.1754944e-38, %v1516
          %v1518 = vsel %vm1515, %v1517, %v1513
          %v1519 = vmul.f32 %v1364, %v1518
          %v1520 = vrcp.pop %v1408
          %v1521 = vmul.f32 %v1408, %v1520
          %v1522 = vsub.f32 1.0, %v1521
          %v1523 = vmul.f32 %v1520, %v1522
          %v1524 = vadd.f32 %v1520, %v1523
          %vm1525 = vweird.f32 %v1408
          %vm1526 = vweird.f32 %v1520
          %vm1527 = vmor %vm1525, %vm1526
          %v1528 = vsel %vm1527, %v1520, %v1524
          %v1529 = vand.u32 2147483647, %v1408
          %vm1530 = vcmp.eq.f32.partialorder %v1529, 8.507059e+37
          %v1531 = vand.u32 %v1408, 2147483648
          %v1532 = vor.u32 1.1754944e-38, %v1531
          %v1533 = vsel %vm1530, %v1532, %v1528
          %v1534 = vmul.f32 %v1366, %v1533
          %v1535 = vrcp.pop %v1411
          %v1536 = vmul.f32 %v1411, %v1535
          %v1537 = vsub.f32 1.0, %v1536
          %v1538 = vmul.f32 %v1535, %v1537
          %v1539 = vadd.f32 %v1535, %v1538
          %vm1540 = vweird.f32 %v1411
          %vm1541 = vweird.f32 %v1535
          %vm1542 = vmor %vm1540, %vm1541
          %v1543 = vsel %vm1542, %v1535, %v1539
          %v1544 = vand.u32 2147483647, %v1411
          %vm1545 = vcmp.eq.f32.partialorder %v1544, 8.507059e+37
          %v1546 = vand.u32 %v1411, 2147483648
          %v1547 = vor.u32 1.1754944e-38, %v1546
          %v1548 = vsel %vm1545, %v1547, %v1543
          %v1549 = vmul.f32 %v1368, %v1548
          %v1550 = vrcp.pop %v1414
          %v1551 = vmul.f32 %v1414, %v1550
          %v1552 = vsub.f32 1.0, %v1551
          %v1553 = vmul.f32 %v1550, %v1552
          %v1554 = vadd.f32 %v1550, %v1553
          %vm1555 = vweird.f32 %v1414
          %vm1556 = vweird.f32 %v1550
          %vm1557 = vmor %vm1555, %vm1556
          %v1558 = vsel %vm1557, %v1550, %v1554
          %v1559 = vand.u32 2147483647, %v1414
          %vm1560 = vcmp.eq.f32.partialorder %v1559, 8.507059e+37
          %v1561 = vand.u32 %v1414, 2147483648
          %v1562 = vor.u32 1.1754944e-38, %v1561
          %v1563 = vsel %vm1560, %v1562, %v1558
          %v1564 = vmul.f32 %v1370, %v1563
          %v1565 = vrcp.pop %v1417
          %v1566 = vmul.f32 %v1417, %v1565
          %v1567 = vsub.f32 1.0, %v1566
          %v1568 = vmul.f32 %v1565, %v1567
          %v1569 = vadd.f32 %v1565, %v1568
          %vm1570 = vweird.f32 %v1417
          %vm1571 = vweird.f32 %v1565
          %vm1572 = vmor %vm1570, %vm1571
          %v1573 = vsel %vm1572, %v1565, %v1569
          %v1574 = vand.u32 2147483647, %v1417
          %vm1575 = vcmp.eq.f32.partialorder %v1574, 8.507059e+37
          %v1576 = vand.u32 %v1417, 2147483648
          %v1577 = vor.u32 1.1754944e-38, %v1576
          %v1578 = vsel %vm1575, %v1577, %v1573
          %v1579 = vmul.f32 %v1372, %v1578
          %v1580 = vrcp.pop %v1420
          %v1581 = vmul.f32 %v1420, %v1580
          %v1582 = vsub.f32 1.0, %v1581
          %v1583 = vmul.f32 %v1580, %v1582
          %v1584 = vadd.f32 %v1580, %v1583
          %vm1585 = vweird.f32 %v1420
          %vm1586 = vweird.f32 %v1580
          %vm1587 = vmor %vm1585, %vm1586
          %v1588 = vsel %vm1587, %v1580, %v1584
          %v1589 = vand.u32 2147483647, %v1420
          %vm1590 = vcmp.eq.f32.partialorder %v1589, 8.507059e+37
          %v1591 = vand.u32 %v1420, 2147483648
          %v1592 = vor.u32 1.1754944e-38, %v1591
          %v1593 = vsel %vm1590, %v1592, %v1588
          %v1594 = vmul.f32 %v1374, %v1593
          %v1595 = vrcp.pop %v1423
          %v1596 = vmul.f32 %v1423, %v1595
          %v1597 = vsub.f32 1.0, %v1596
          %v1598 = vmul.f32 %v1595, %v1597
          %v1599 = vadd.f32 %v1595, %v1598
          %vm1600 = vweird.f32 %v1423
          %vm1601 = vweird.f32 %v1595
          %vm1602 = vmor %vm1600, %vm1601
          %v1603 = vsel %vm1602, %v1595, %v1599
          %v1604 = vand.u32 2147483647, %v1423
          %vm1605 = vcmp.eq.f32.partialorder %v1604, 8.507059e+37
          %v1606 = vand.u32 %v1423, 2147483648
          %v1607 = vor.u32 1.1754944e-38, %v1606
          %v1608 = vsel %vm1605, %v1607, %v1603
          %v1609 = vmul.f32 %v1376, %v1608
          %v1610 = vrcp.pop %v1426
          %v1611 = vmul.f32 %v1426, %v1610
          %v1612 = vsub.f32 1.0, %v1611
          %v1613 = vmul.f32 %v1610, %v1612
          %v1614 = vadd.f32 %v1610, %v1613
          %vm1615 = vweird.f32 %v1426
          %vm1616 = vweird.f32 %v1610
          %vm1617 = vmor %vm1615, %vm1616
          %v1618 = vsel %vm1617, %v1610, %v1614
          %v1619 = vand.u32 2147483647, %v1426
          %vm1620 = vcmp.eq.f32.partialorder %v1619, 8.507059e+37
          %v1621 = vand.u32 %v1426, 2147483648
          %v1622 = vor.u32 1.1754944e-38, %v1621
          %v1623 = vsel %vm1620, %v1622, %v1618
          %v1624 = vmul.f32 %v1378, %v1623
          %v1625 = vrcp.pop %v1429
          %v1626 = vmul.f32 %v1429, %v1625
          %v1627 = vsub.f32 1.0, %v1626
          %v1628 = vmul.f32 %v1625, %v1627
          %v1629 = vadd.f32 %v1625, %v1628
          %vm1630 = vweird.f32 %v1429
          %vm1631 = vweird.f32 %v1625
          %vm1632 = vmor %vm1630, %vm1631
          %v1633 = vsel %vm1632, %v1625, %v1629
          %v1634 = vand.u32 2147483647, %v1429
          %vm1635 = vcmp.eq.f32.partialorder %v1634, 8.507059e+37
          %v1636 = vand.u32 %v1429, 2147483648
          %v1637 = vor.u32 1.1754944e-38, %v1636
          %v1638 = vsel %vm1635, %v1637, %v1633
          %v1639 = vmul.f32 %v1380, %v1638
          %v1640 = vrcp.pop %v1432
          %v1641 = vmul.f32 %v1432, %v1640
          %v1642 = vsub.f32 1.0, %v1641
          %v1643 = vmul.f32 %v1640, %v1642
          %v1644 = vadd.f32 %v1640, %v1643
          %vm1645 = vweird.f32 %v1432
          %vm1646 = vweird.f32 %v1640
          %vm1647 = vmor %vm1645, %vm1646
          %v1648 = vsel %vm1647, %v1640, %v1644
          %v1649 = vand.u32 2147483647, %v1432
          %vm1650 = vcmp.eq.f32.partialorder %v1649, 8.507059e+37
          %v1651 = vand.u32 %v1432, 2147483648
          %v1652 = vor.u32 1.1754944e-38, %v1651
          %v1653 = vsel %vm1650, %v1652, %v1648
          %v1654 = vmul.f32 %v1382, %v1653
          %v1655 = vrcp.pop %v1435
          %v1656 = vmul.f32 %v1435, %v1655
          %v1657 = vsub.f32 1.0, %v1656
          %v1658 = vmul.f32 %v1655, %v1657
          %v1659 = vadd.f32 %v1655, %v1658
          %vm1660 = vweird.f32 %v1435
          %vm1661 = vweird.f32 %v1655
          %vm1662 = vmor %vm1660, %vm1661
          %v1663 = vsel %vm1662, %v1655, %v1659
          %v1664 = vand.u32 2147483647, %v1435
          %vm1665 = vcmp.eq.f32.partialorder %v1664, 8.507059e+37
          %v1666 = vand.u32 %v1435, 2147483648
          %v1667 = vor.u32 1.1754944e-38, %v1666
          %v1668 = vsel %vm1665, %v1667, %v1663
          %v1669 = vmul.f32 %v1384, %v1668
          %v1670 = vrcp.pop %v1438
          %v1671 = vmul.f32 %v1438, %v1670
          %v1672 = vsub.f32 1.0, %v1671
          %v1673 = vmul.f32 %v1670, %v1672
          %v1674 = vadd.f32 %v1670, %v1673
          %vm1675 = vweird.f32 %v1438
          %vm1676 = vweird.f32 %v1670
          %vm1677 = vmor %vm1675, %vm1676
          %v1678 = vsel %vm1677, %v1670, %v1674
          %v1679 = vand.u32 2147483647, %v1438
          %vm1680 = vcmp.eq.f32.partialorder %v1679, 8.507059e+37
          %v1681 = vand.u32 %v1438, 2147483648
          %v1682 = vor.u32 1.1754944e-38, %v1681
          %v1683 = vsel %vm1680, %v1682, %v1678
          %v1684 = vmul.f32 %v1386, %v1683
          %v1685 = vrcp.pop %v1441
          %v1686 = vmul.f32 %v1441, %v1685
          %v1687 = vsub.f32 1.0, %v1686
          %v1688 = vmul.f32 %v1685, %v1687
          %v1689 = vadd.f32 %v1685, %v1688
          %vm1690 = vweird.f32 %v1441
          %vm1691 = vweird.f32 %v1685
          %vm1692 = vmor %vm1690, %vm1691
          %v1693 = vsel %vm1692, %v1685, %v1689
          %v1694 = vand.u32 2147483647, %v1441
          %vm1695 = vcmp.eq.f32.partialorder %v1694, 8.507059e+37
          %v1696 = vand.u32 %v1441, 2147483648
          %v1697 = vor.u32 1.1754944e-38, %v1696
          %v1698 = vsel %vm1695, %v1697, %v1693
          %v1699 = vmul.f32 %v1388, %v1698
          %v1700 = vrcp.pop %v1444
          %v1701 = vmul.f32 %v1444, %v1700
          %v1702 = vsub.f32 1.0, %v1701
          %v1703 = vmul.f32 %v1700, %v1702
          %v1704 = vadd.f32 %v1700, %v1703
          %vm1705 = vweird.f32 %v1444
          %vm1706 = vweird.f32 %v1700
          %vm1707 = vmor %vm1705, %vm1706
          %v1708 = vsel %vm1707, %v1700, %v1704
          %v1709 = vand.u32 2147483647, %v1444
          %vm1710 = vcmp.eq.f32.partialorder %v1709, 8.507059e+37
          %v1711 = vand.u32 %v1444, 2147483648
          %v1712 = vor.u32 1.1754944e-38, %v1711
          %v1713 = vsel %vm1710, %v1712, %v1708
          %v1714 = vmul.f32 %v1390, %v1713
          %v1715 = vld [vmem:[%s463] sm:$0xff]
          %v1716 = vld [vmem:[%s463 + $0x8] sm:$0xff]
          %v1717 = vld [vmem:[%s463 + $0x10] sm:$0xff]
          %v1718 = vld [vmem:[%s463 + $0x18] sm:$0xff]
          %v1719 = vld [vmem:[%s463 + $0x20] sm:$0xff]
          %v1720 = vld [vmem:[%s463 + $0x28] sm:$0xff]
          %v1721 = vld [vmem:[%s463 + $0x30] sm:$0xff]
          %v1722 = vld [vmem:[%s463 + $0x38] sm:$0xff]
          %v1723 = vld [vmem:[%s463 + $0x40] sm:$0xff]
          %v1724 = vld [vmem:[%s463 + $0x48] sm:$0xff]
          %v1725 = vld [vmem:[%s463 + $0x50] sm:$0xff]
          %v1726 = vld [vmem:[%s463 + $0x58] sm:$0xff]
          %v1727 = vld [vmem:[%s463 + $0x60] sm:$0xff]
          %v1728 = vld [vmem:[%s463 + $0x68] sm:$0xff]
          %v1729 = vld [vmem:[%s463 + $0x70] sm:$0xff]
          %v1730 = vld [vmem:[%s463 + $0x78] sm:$0xff]
          %v1731 = vld [vmem:[%s463 + $0x80] sm:$0xff]
          %v1732 = vld [vmem:[%s463 + $0x88] sm:$0xff]
          %1734 = vset.pattern.permute.xlu0 0
          %1735 = vperm.xlu0 %1734, %v1715
          %v1736 = vpop.permute.xlu0 %1735
          %1739 = vset.pattern.permute.xlu0 0
          %1740 = vperm.xlu0 %1739, %v1716
          %v1741 = vpop.permute.xlu0 %1740
          %1744 = vset.pattern.permute.xlu0 0
          %1745 = vperm.xlu0 %1744, %v1717
          %v1746 = vpop.permute.xlu0 %1745
          %1749 = vset.pattern.permute.xlu0 0
          %1750 = vperm.xlu0 %1749, %v1718
          %v1751 = vpop.permute.xlu0 %1750
          %1754 = vset.pattern.permute.xlu0 0
          %1755 = vperm.xlu0 %1754, %v1719
          %v1756 = vpop.permute.xlu0 %1755
          %1759 = vset.pattern.permute.xlu0 0
          %1760 = vperm.xlu0 %1759, %v1720
          %v1761 = vpop.permute.xlu0 %1760
          %1764 = vset.pattern.permute.xlu0 0
          %1765 = vperm.xlu0 %1764, %v1721
          %v1766 = vpop.permute.xlu0 %1765
          %1769 = vset.pattern.permute.xlu0 0
          %1770 = vperm.xlu0 %1769, %v1722
          %v1771 = vpop.permute.xlu0 %1770
          %1774 = vset.pattern.permute.xlu0 0
          %1775 = vperm.xlu0 %1774, %v1723
          %v1776 = vpop.permute.xlu0 %1775
          %1779 = vset.pattern.permute.xlu0 0
          %1780 = vperm.xlu0 %1779, %v1724
          %v1781 = vpop.permute.xlu0 %1780
          %1784 = vset.pattern.permute.xlu0 0
          %1785 = vperm.xlu0 %1784, %v1725
          %v1786 = vpop.permute.xlu0 %1785
          %1789 = vset.pattern.permute.xlu0 0
          %1790 = vperm.xlu0 %1789, %v1726
          %v1791 = vpop.permute.xlu0 %1790
          %1794 = vset.pattern.permute.xlu0 0
          %1795 = vperm.xlu0 %1794, %v1727
          %v1796 = vpop.permute.xlu0 %1795
          %1799 = vset.pattern.permute.xlu0 0
          %1800 = vperm.xlu0 %1799, %v1728
          %v1801 = vpop.permute.xlu0 %1800
          %1804 = vset.pattern.permute.xlu0 0
          %1805 = vperm.xlu0 %1804, %v1729
          %v1806 = vpop.permute.xlu0 %1805
          %1809 = vset.pattern.permute.xlu0 0
          %1810 = vperm.xlu0 %1809, %v1730
          %v1811 = vpop.permute.xlu0 %1810
          %1814 = vset.pattern.permute.xlu0 0
          %1815 = vperm.xlu0 %1814, %v1731
          %v1816 = vpop.permute.xlu0 %1815
          %1819 = vset.pattern.permute.xlu0 0
          %1820 = vperm.xlu0 %1819, %v1732
          %v1821 = vpop.permute.xlu0 %1820
          %v1823 = vmul.f32 %v1459, %v1736
          %v1824 = vmul.f32 %v1474, %v1741
          %v1825 = vmul.f32 %v1489, %v1746
          %v1826 = vmul.f32 %v1504, %v1751
          %v1827 = vmul.f32 %v1519, %v1756
          %v1828 = vmul.f32 %v1534, %v1761
          %v1829 = vmul.f32 %v1549, %v1766
          %v1830 = vmul.f32 %v1564, %v1771
          %v1831 = vmul.f32 %v1579, %v1776
          %v1832 = vmul.f32 %v1594, %v1781
          %v1833 = vmul.f32 %v1609, %v1786
          %v1834 = vmul.f32 %v1624, %v1791
          %v1835 = vmul.f32 %v1639, %v1796
          %v1836 = vmul.f32 %v1654, %v1801
          %v1837 = vmul.f32 %v1669, %v1806
          %v1838 = vmul.f32 %v1684, %v1811
          %v1839 = vmul.f32 %v1699, %v1816
          %v1840 = vmul.f32 %v1714, %v1821
          %v1841 = vld [vmem:[%s5] sm:$0xff]
          %v1842 = vld [vmem:[%s5 + $0x8] sm:$0xff]
          %v1843 = vld [vmem:[%s5 + $0x10] sm:$0xff]
          %v1844 = vld [vmem:[%s5 + $0x18] sm:$0xff]
          %v1845 = vld [vmem:[%s5 + $0x20] sm:$0xff]
          %v1846 = vld [vmem:[%s5 + $0x28] sm:$0xff]
          %vm1847 = vcmask 130048
          %v1849 = vsel %vm1847, %v1842, 0
          %v1852 = vsel %vm1847, %v1844, 0
          %v1855 = vsel %vm1847, %v1846, 0
          %1857 = vmatpush.msra.mxu0 %v1838
          %1858 = vmatpush.msra.mxu0 %v1837
          %1859 = vmatpush.msra.mxu0 %v1836
          %1860 = vmatpush.msra.mxu0 %v1835
          %1861 = vmatpush.msra.mxu0 %v1834
          %1862 = vmatpush.msra.mxu0 %v1833
          %1863 = vmatpush.msra.mxu0 %v1832
          %1864 = vmatpush.msra.mxu0 %v1831
          %1865 = vmatpush.msra.mxu0 %v1830
          %1866 = vmatpush.msra.mxu0 %v1829
          %1867 = vmatpush.msra.mxu0 %v1828
          %1868 = vmatpush.msra.mxu0 %v1827
          %1869 = vmatpush.msra.mxu0 %v1826
          %1870 = vmatpush.msra.mxu0 %v1825
          %1871 = vmatpush.msra.mxu0 %v1824
          %1872 = vmatpush.msra.mxu0 %v1823
          %1873 = vmatmul.f32.gmra.mxu0 %v1841
          %v1874 = vpop.f32.mrf.mxu0
          %v1875 = vadd.f32 0.0, %v1874
          %1876 = vmatmul.f32.gmra.mxu0 %v1843
          %v1877 = vpop.f32.mrf.mxu0
          %v1878 = vadd.f32 0.0, %v1877
          %1879 = vmatmul.f32.gmra.mxu0 %v1845
          %v1880 = vpop.f32.mrf.mxu0
          %v1881 = vadd.f32 0.0, %v1880
          %1882 = vdwg.mxu0
          %1883 = vmatpush.msra.mxu0 0.0
          %1884 = vmatpush.msra.mxu0 0.0
          %1885 = vmatpush.msra.mxu0 0.0
          %1886 = vmatpush.msra.mxu0 0.0
          %1887 = vmatpush.msra.mxu0 0.0
          %1888 = vmatpush.msra.mxu0 0.0
          %1889 = vmatpush.msra.mxu0 0.0
          %1890 = vmatpush.msra.mxu0 0.0
          %1891 = vmatpush.msra.mxu0 0.0
          %1892 = vmatpush.msra.mxu0 0.0
          %1893 = vmatpush.msra.mxu0 0.0
          %1894 = vmatpush.msra.mxu0 0.0
          %1895 = vmatpush.msra.mxu0 0.0
          %1896 = vmatpush.msra.mxu0 0.0
          %1897 = vmatpush.msra.mxu0 %v1840
          %1898 = vmatpush.msra.mxu0 %v1839
          %1899 = vmatmul.f32.gmra.mxu0 %v1849
          %v1900 = vpop.f32.mrf.mxu0
          %v1901 = vadd.f32 %v1875, %v1900
          %1902 = vmatmul.f32.gmra.mxu0 %v1852
          %v1903 = vpop.f32.mrf.mxu0
          %v1904 = vadd.f32 %v1878, %v1903
          %1905 = vmatmul.f32.gmra.mxu0 %v1855
          %v1906 = vpop.f32.mrf.mxu0
          %v1907 = vadd.f32 %v1881, %v1906
          %1908 = vdwg.mxu0
          %v1909 = vld [vmem:[%s469] sm:$0xff]
          %v1910 = vld [vmem:[%s469 + $0x8] sm:$0xff]
          %v1911 = vld [vmem:[%s469 + $0x10] sm:$0xff]
          %vm1912 = vcmask 48128
          %v1913 = vsel %vm1912, %v1909, 0.0
          %1914 = vadd.xlane.f32.xlu0 %v1913
          %v1915 = vpop.xlane.xlu0 %1914
          %v1916 = vsel %vm1912, %v1910, 0.0
          %1917 = vadd.xlane.f32.xlu0 %v1916
          %v1918 = vpop.xlane.xlu0 %1917
          %v1919 = vsel %vm1912, %v1911, 0.0
          %1920 = vadd.xlane.f32.xlu0 %v1919
          %v1921 = vpop.xlane.xlu0 %1920
          %v1922 = vadd.f32 %v1915, 1e-05
          %v1923 = vadd.f32 %v1918, 1e-05
          %v1924 = vadd.f32 %v1921, 1e-05
          %v1925 = vrcp.pop %v1922
          %v1926 = vmul.f32 %v1922, %v1925
          %v1927 = vsub.f32 1.0, %v1926
          %v1928 = vmul.f32 %v1925, %v1927
          %v1929 = vadd.f32 %v1925, %v1928
          %vm1930 = vweird.f32 %v1922
          %vm1931 = vweird.f32 %v1925
          %vm1932 = vmor %vm1930, %vm1931
          %v1933 = vsel %vm1932, %v1925, %v1929
          %v1934 = vand.u32 2147483647, %v1922
          %vm1935 = vcmp.eq.f32.partialorder %v1934, 8.507059e+37
          %v1936 = vand.u32 %v1922, 2147483648
          %v1937 = vor.u32 1.1754944e-38, %v1936
          %v1938 = vsel %vm1935, %v1937, %v1933
          %v1939 = vmul.f32 %v1901, %v1938
          %v1940 = vrcp.pop %v1923
          %v1941 = vmul.f32 %v1923, %v1940
          %v1942 = vsub.f32 1.0, %v1941
          %v1943 = vmul.f32 %v1940, %v1942
          %v1944 = vadd.f32 %v1940, %v1943
          %vm1945 = vweird.f32 %v1923
          %vm1946 = vweird.f32 %v1940
          %vm1947 = vmor %vm1945, %vm1946
          %v1948 = vsel %vm1947, %v1940, %v1944
          %v1949 = vand.u32 2147483647, %v1923
          %vm1950 = vcmp.eq.f32.partialorder %v1949, 8.507059e+37
          %v1951 = vand.u32 %v1923, 2147483648
          %v1952 = vor.u32 1.1754944e-38, %v1951
          %v1953 = vsel %vm1950, %v1952, %v1948
          %v1954 = vmul.f32 %v1904, %v1953
          %v1955 = vrcp.pop %v1924
          %v1956 = vmul.f32 %v1924, %v1955
          %v1957 = vsub.f32 1.0, %v1956
          %v1958 = vmul.f32 %v1955, %v1957
          %v1959 = vadd.f32 %v1955, %v1958
          %vm1960 = vweird.f32 %v1924
          %vm1961 = vweird.f32 %v1955
          %vm1962 = vmor %vm1960, %vm1961
          %v1963 = vsel %vm1962, %v1955, %v1959
          %v1964 = vand.u32 2147483647, %v1924
          %vm1965 = vcmp.eq.f32.partialorder %v1964, 8.507059e+37
          %v1966 = vand.u32 %v1924, 2147483648
          %v1967 = vor.u32 1.1754944e-38, %v1966
          %v1968 = vsel %vm1965, %v1967, %v1963
          %v1969 = vmul.f32 %v1907, %v1968
          %v1970 = vsel %vm1282, %v1939, -inf
          %1971 = vmax.xlane.f32.xlu0 %v1970
          %v1972 = vpop.xlane.xlu0 %1971
          %v1973 = vsel %vm1282, %v1954, -inf
          %1974 = vmax.xlane.f32.xlu0 %v1973
          %v1975 = vpop.xlane.xlu0 %1974
          %v1976 = vsel %vm1282, %v1969, -inf
          %1977 = vmax.xlane.f32.xlu0 %v1976
          %v1978 = vpop.xlane.xlu0 %1977
          %v1979 = vlaneseq
          %v1980 = vand.u32 %v1979, 127
          %vm1981 = vcmp.eq.f32.partialorder %v1939, %v1972
          %vm1982 = vcmp.eq.f32.partialorder %v1954, %v1975
          %vm1983 = vcmp.eq.f32.partialorder %v1969, %v1978
          %v1984 = vsel %vm1981, %v1980, 10
          %v1985 = vsel %vm1982, %v1980, 10
          %v1986 = vsel %vm1983, %v1980, 10
          %v1987 = vsel %vm1282, %v1984, 2147483647
          %v1988 = vand.u32 %v1987, 65535
          %v1989 = vshra.s32 %v1987, 16
          %v1990 = vcvt.s32.f32 %v1988
          %v1991 = vcvt.s32.f32 %v1989
          %1992 = vmin.xlane.f32.xlu0 %v1991
          %v1993 = vpop.xlane.xlu0 %1992
          %vm1994 = vcmp.eq.f32.partialorder %v1991, %v1993
          %v1995 = vsel %vm1994, %v1990, inf
          %1996 = vmin.xlane.f32.xlu0 %v1995
          %v1997 = vpop.xlane.xlu0 %1996
          %v1998 = vcvt.f32.s32 %v1997
          %v1999 = vcvt.f32.s32 %v1993
          %v2000 = vshll.u32 %v1999, 16
          %v2001 = vadd.s32 %v2000, %v1998
          %v2002 = vsel %vm1282, %v1985, 2147483647
          %v2003 = vand.u32 %v2002, 65535
          %v2004 = vshra.s32 %v2002, 16
          %v2005 = vcvt.s32.f32 %v2003
          %v2006 = vcvt.s32.f32 %v2004
          %2007 = vmin.xlane.f32.xlu0 %v2006
          %v2008 = vpop.xlane.xlu0 %2007
          %vm2009 = vcmp.eq.f32.partialorder %v2006, %v2008
          %v2010 = vsel %vm2009, %v2005, inf
          %2011 = vmin.xlane.f32.xlu0 %v2010
          %v2012 = vpop.xlane.xlu0 %2011
          %v2013 = vcvt.f32.s32 %v2012
          %v2014 = vcvt.f32.s32 %v2008
          %v2015 = vshll.u32 %v2014, 16
          %v2016 = vadd.s32 %v2015, %v2013
          %v2017 = vsel %vm1282, %v1986, 2147483647
          %v2018 = vand.u32 %v2017, 65535
          %v2019 = vshra.s32 %v2017, 16
          %v2020 = vcvt.s32.f32 %v2018
          %v2021 = vcvt.s32.f32 %v2019
          %2022 = vmin.xlane.f32.xlu0 %v2021
          %v2023 = vpop.xlane.xlu0 %2022
          %vm2024 = vcmp.eq.f32.partialorder %v2021, %v2023
          %v2025 = vsel %vm2024, %v2020, inf
          %2026 = vmin.xlane.f32.xlu0 %v2025
          %v2027 = vpop.xlane.xlu0 %2026
          %v2028 = vcvt.f32.s32 %v2027
          %v2029 = vcvt.f32.s32 %v2023
          %v2030 = vshll.u32 %v2029, 16
          %v2031 = vadd.s32 %v2030, %v2028
          %vm2032 = vcmp.ge.s32.totalorder %v2001, 10
          %vm2033 = vcmp.ge.s32.totalorder %v2016, 10
          %vm2034 = vcmp.ge.s32.totalorder %v2031, 10
          %v2035 = vsel %vm2032, 0, %v2001
          %v2036 = vsel %vm2033, 0, %v2016
          %v2037 = vsel %vm2034, 0, %v2031
          %vm2038 = vcmp.ne.f32.partialorder %v1972, %v1972
          %vm2039 = vcmp.ne.f32.partialorder %v1975, %v1975
          %vm2040 = vcmp.ne.f32.partialorder %v1978, %v1978
          %v2041 = vsel %vm2038, 0.0, %v1972
          %v2042 = vsel %vm2039, 0.0, %v1975
          %v2043 = vsel %vm2040, 0.0, %v1978
          %vm2044 = vcmask 7168
          %2045 = vst.msk [vmem:[%s475] sm:$0xff] %vm2044, %v2041
          %2046 = vst.msk [vmem:[%s475 + $0x8] sm:$0xff] %vm2044, %v2042
          %2047 = vst.msk [vmem:[%s475 + $0x10] sm:$0xff] %vm2044, %v2043
          %2048 = vst.msk [vmem:[%s481] sm:$0xff] %vm2044, %v2035
          %2049 = vst.msk [vmem:[%s481 + $0x8] sm:$0xff] %vm2044, %v2036
          %2050 = vst.msk [vmem:[%s481 + $0x10] sm:$0xff] %vm2044, %v2037
        $region90: #{clip_box_classification_forward.1} parent=77 // pred_fallthru
          _
        %s2051 = smul.u32 3, %s23
        %p2052 = scmp.lt.s32.totalorder %s2051, 2
        %s2053 = scalar_select %p2052, %s2051, 2
        %s2054 = smul.addr %s2053, 8
        %s2055 = scalar_lea.vmem %s6, %s2054
        %s2056 = smul.u32 3, %s23
        %p2057 = scmp.lt.s32.totalorder %s2056, 2
        %s2058 = scalar_select %p2057, %s2056, 2
        %s2059 = smul.addr %s2058, 8
        %s2060 = scalar_lea.vmem %s7, %s2059
        // Predicated region
        $region91: #{clip_box_classification_forward.1} parent=77 // pred_check
          %p2061 = pneg %p197
        $region92: #{clip_box_classification_forward.1} parent=77 // pred_check_branch
          %2063 = sbr.rel (%p2061) target = $region94
        $region93: #{clip_box_classification_forward.1} parent=77 // pred_region
          %s2064 = smul.u32 3, %s23
        $region94: #{clip_box_classification_forward.1} parent=77 // pred_fallthru
          _
        // Predicated region
        $region95: #{clip_box_classification_forward.1} parent=77 // pred_check
          %p2065 = pneg %p223
        $region96: #{clip_box_classification_forward.1} parent=77 // pred_check_branch
          %2067 = sbr.rel (%p2065) target = $region98
        $region97: #{clip_box_classification_forward.1} parent=77 // pred_region
          %s2068 = smul.u32 3, %s23
        $region98: #{clip_box_classification_forward.1} parent=77 // pred_fallthru
          _
        // Predicated region
        $region99: #{clip_box_classification_forward.1} parent=77 // pred_check
          %p2069 = pneg %p197
        $region100: #{clip_box_classification_forward.1} parent=77 // pred_check_branch
          %2071 = sbr.rel (%p2069) target = $region102
        $region101: #{clip_box_classification_forward.1} parent=77 // pred_region
          %s2072 = smul.u32 3, %s23
          %p2073 = scmp.lt.s32.totalorder %s2072, 2
          %s2074 = scalar_select %p2073, %s2072, 2
          %s2075 = smul.addr %s2074, 8
          %s2076 = scalar_lea.vmem %s6, %s2075
        $region102: #{clip_box_classification_forward.1} parent=77 // pred_fallthru
          _
        // Predicated region
        $region103: #{clip_box_classification_forward.1} parent=77 // pred_check
          %p2077 = pneg %p223
        $region104: #{clip_box_classification_forward.1} parent=77 // pred_check_branch
          %2079 = sbr.rel (%p2077) target = $region106
        $region105: #{clip_box_classification_forward.1} parent=77 // pred_region
          %s2080 = smul.u32 3, %s23
          %p2081 = scmp.lt.s32.totalorder %s2080, 2
          %s2082 = scalar_select %p2081, %s2080, 2
          %s2083 = smul.addr %s2082, 8
          %s2084 = scalar_lea.vmem %s7, %s2083
        $region106: #{clip_box_classification_forward.1} parent=77 // pred_fallthru
          _
      $region78: #{clip_box_classification_forward.1} parent=5 // pred_fallthru
        _
      %p2085 = scmp.le.s32.totalorder 2, %s14
      // Predicated region
      $region107: #{clip_box_classification_forward.1} parent=5 // pred_check
        %p2086 = pneg %p2085
      $region108: #{clip_box_classification_forward.1} parent=5 // pred_check_branch
        %2088 = sbr.rel (%p2086) target = $region110
      $region109: #{clip_box_classification_forward.1} parent=5 // pred_region
        %s2089 = ssub.s32 %s14, 2
      $region110: #{clip_box_classification_forward.1} parent=5 // pred_fallthru
        _
    $region6: #{clip_box_classification_forward.1} parent=1 // loop_footer
      %s18 = sadd.s32 1, %s14
    $region7: #{clip_box_classification_forward.1} parent=1 // loop_footer_branch
      %13 = sbr.rel target = $region3
    $region8: #{clip_box_classification_forward.1} parent=1 // loop_exit
      _

</llo_original>
